<compile_context>
chip_gen: v5e
topology: v5e:2x2
jax: 0.10.0
libtpu: 0.0.40
codegen_flags: <defaults>
</compile_context>

<pallas_src>
import functools

import jax
import jax.numpy as jnp
from jax import lax
from jax.experimental import pallas as pl
from jax.experimental.pallas import tpu as pltpu

_LANES = 128
_SUBLANES = 8
_FUSED_CIN_THRESHOLD = 64        # fused-K im2col path only when Cin is large


def _round_up(x, m):
    return ((x + m - 1) // m) * m


def _ds(start, size, stride=1):
    """pl.ds helper: only emit a strided slice when stride > 1."""
    return pl.ds(start, size) if stride == 1 else pl.ds(start, size, stride)


def _vmem_limit_bytes():
    """Generation-aware scoped-VMEM limit: ~3/4 of per-core capacity, capped
    at 96 MiB (v5e/v6e, 128 MiB cores) and ~48 MiB on v7x (64 MiB cores)."""
    cap = 128 * 1024 * 1024
    try:
        cap = int(getattr(pltpu.get_tpu_info(), "vmem_capacity_bytes", cap))
    except Exception:            # API unavailable: keep conservative default
        pass
    return max(32 * 1024 * 1024, min(cap * 3 // 4, 96 * 1024 * 1024))


def _store_stats(psum_ref, acc, t, *, th, w_out, h_out, mask_rows):
    """Per-tile per-channel [sum, sum of squares]; rows past h_out (remainder
    row tile) are masked out so the global batch statistics stay exact."""
    if mask_rows:
        valid = jnp.minimum(h_out - t * th, th) * w_out
        col = lax.broadcasted_iota(jnp.int32, (1, acc.shape[1]), 1)
        acc = jnp.where(col < valid, acc, 0.0)
    # acc is (Cout, M): lane reductions are the cheap (native) XLU direction.
    psum_ref[0, 0, :, 0:1] = jnp.sum(acc, axis=1, keepdims=True)
    psum_ref[0, 0, :, 1:2] = jnp.sum(acc * acc, axis=1, keepdims=True)


def _conv_taps_kernel(x_ref, w_ref, b_ref, conv_ref, psum_ref, *,
                      stride, kh, kw, th, w_out, cin, cout, h_out, mask_rows):
    """Small-Cin path: direct accumulation of kh*kw shifted-window matmuls."""
    # x_ref   : (1, Hp, Wp, Cin)    padded image, resident across row tiles
    # w_ref   : (kh*kw, Cout, Cin)  per-tap weights
    # b_ref   : (Cout, 1)           conv bias
    # conv_ref: (1, Cout, M)        conv+bias tile, channel-major, lane-dense
    # psum_ref: (1, 1, Cout, 2)     per-tile [sum, sum^2]
    t = pl.program_id(1)
    m = th * w_out
    row0 = pl.multiple_of(t * (th * stride), th * stride)

    acc = jnp.zeros((cout, m), jnp.float32)
    for i in range(kh):
        for j in range(kw):
            sl = x_ref[0, _ds(row0 + i, th, stride), _ds(j, w_out, stride), :]
            # (Cout, Cin) x (M, Cin)^T -> (Cout, M): output is NCHW-major
            # straight off the MXU, so no transpose is needed anywhere.
            acc = acc + lax.dot_general(
                w_ref[i * kw + j], sl.reshape(m, cin),
                dimension_numbers=(((1,), (1,)), ((), ())),
                preferred_element_type=jnp.float32)
    acc = acc + b_ref[...]
    conv_ref[0] = acc.astype(conv_ref.dtype)
    _store_stats(psum_ref, acc, t, th=th, w_out=w_out, h_out=h_out,
                 mask_rows=mask_rows)


def _conv_fused_kernel(x_ref, w_ref, b_ref, conv_ref, psum_ref, patch_ref, *,
                       stride, kh, kw, th, w_out, cin, cout, h_out, kdim,
                       mask_rows):
    """Large-Cin path: implicit im2col patch + one fused-K MXU matmul."""
    # w_ref    : (Cout, Kp)   fused taps, K padded to a multiple of 8
    # patch_ref: (M, Kp)      VMEM scratch for the im2col patch
    t = pl.program_id(1)
    m = th * w_out
    row0 = pl.multiple_of(t * (th * stride), th * stride)

    for i in range(kh):
        for j in range(kw):
            sl = x_ref[0, _ds(row0 + i, th, stride), _ds(j, w_out, stride), :]
            k0 = (i * kw + j) * cin
            patch_ref[:, k0:k0 + cin] = sl.reshape(m, cin)
    kdim_p = patch_ref.shape[1]
    if kdim_p != kdim:                      # keep the K padding columns clean
        patch_ref[:, kdim:] = jnp.zeros((m, kdim_p - kdim), jnp.float32)

    acc = lax.dot_general(w_ref[...], patch_ref[...],
                          dimension_numbers=(((1,), (1,)), ((), ())),
                          preferred_element_type=jnp.float32)   # (Cout, M)
    acc = acc + b_ref[...]
    conv_ref[0] = acc.astype(conv_ref.dtype)
    _store_stats(psum_ref, acc, t, th=th, w_out=w_out, h_out=h_out,
                 mask_rows=mask_rows)


def _bn_relu_kernel(conv_ref, scale_ref, shift_ref, o_ref):
    """Stream-through normalize: y = conv*scale + shift, then ReLU."""
    y = conv_ref[0].astype(jnp.float32) * scale_ref[...] + shift_ref[...]
    o_ref[0] = jnp.maximum(y, 0.0)


def _pick_row_tile(n, h_out, w_out, fits):
    """Output rows per tile.  Unless one tile covers all of h_out, th*w_out
    must be a multiple of 128 so every HBM block stays lane-dense and
    BlockSpec-legal.  Prefer (a) fitting VMEM, (b) near-as-large exact
    divisors (no stat masking / output crop), (c) the largest M."""
    cands = [t for t in range(1, h_out + 1)
             if t == h_out or (t * w_out) % _LANES == 0]
    fitting = [t for t in cands if fits(t)] or [min(cands)]
    best = max(fitting)
    divs = [t for t in fitting if h_out % t == 0]
    if divs and 2 * max(divs) >= best:
        best = max(divs)
    # v7x megacore: with a single batch, give the (parallel) row axis >=2 steps
    if n == 1 and best == h_out and h_out > 1:
        smaller = [t for t in fitting if 2 * t <= h_out]
        if smaller and 4 * max(smaller) >= h_out:
            best = max(smaller)
    return best


def convolution_forward(x_nchw, weight, bias, gamma, beta, *,
                        stride=1, padding=1, eps=1e-5,
                        conv_dtype=jnp.float32):
    """relu(batchnorm_train(conv2d(x))) for NCHW x / OIHW weight (PyTorch
    layouts).  `conv_dtype=jnp.bfloat16` halves the conv-intermediate HBM
    traffic (at ~1e-3 accuracy); kept f32 by default to match the module's
    f32 forward exactly."""
    n, cin, h, w = x_nchw.shape
    cout, _, kh, kw = weight.shape
    h_out = (h + 2 * padding - kh) // stride + 1
    w_out = (w + 2 * padding - kw) // stride + 1
    kdim = kh * kw * cin
    kdim_p = _round_up(kdim, _SUBLANES)
    use_fused = cin >= _FUSED_CIN_THRESHOLD

    vmem_limit = _vmem_limit_bytes()
    hp0, wp = h + 2 * padding, w + 2 * padding

    def fits(th):
        m = th * w_out
        hp_t = max(hp0, (pl.cdiv(h_out, th) * th - 1) * stride + kh)
        used = 2 * hp_t * wp * cin * 4                  # resident image, x2 buf
        used += 4 * m * cout * 4                        # conv/out blocks, x2 buf
        used += 2 * cout * 2 * 4 + 2 * cout * 4         # psum + bias blocks
        used += 2 * (cout * kdim_p if use_fused
                     else kh * kw * cout * cin) * 4     # weights, x2 buf
        if use_fused:
            used += m * kdim_p * 4                      # im2col scratch
        return used <= (vmem_limit * 3) // 5            # headroom for pipeline

    th = _pick_row_tile(n, h_out, w_out, fits)
    n_h = pl.cdiv(h_out, th)
    m = th * w_out
    h_out_pad = n_h * th
    mask_rows = h_out_pad != h_out
    hp = max(hp0, (h_out_pad - 1) * stride + kh)        # rows incl. last halo

    # ---- wrapper-side layout prep (one-time, O(input)) ----------------------
    x_nhwc = jnp.transpose(x_nchw, (0, 2, 3, 1)).astype(jnp.float32)
    x_pad = jnp.pad(x_nhwc, ((0, 0), (padding, hp - h - padding),
                             (padding, padding), (0, 0)))
    b2 = bias.astype(jnp.float32).reshape(cout, 1)

    if use_fused:
        w_arr = jnp.transpose(weight, (0, 2, 3, 1)).reshape(cout, kdim)
        w_arr = jnp.pad(w_arr.astype(jnp.float32), ((0, 0), (0, kdim_p - kdim)))
        w_spec = pl.BlockSpec((cout, kdim_p), lambda b, t: (0, 0))
        conv_kernel = functools.partial(
            _conv_fused_kernel, stride=stride, kh=kh, kw=kw, th=th,
            w_out=w_out, cin=cin, cout=cout, h_out=h_out, kdim=kdim,
            mask_rows=mask_rows)
        scratch = [pltpu.VMEM((m, kdim_p), jnp.float32)]
    else:
        w_arr = jnp.transpose(weight, (2, 3, 0, 1)).reshape(kh * kw, cout, cin)
        w_arr = w_arr.astype(jnp.float32)
        w_spec = pl.BlockSpec((kh * kw, cout, cin), lambda b, t: (0, 0, 0))
        conv_kernel = functools.partial(
            _conv_taps_kernel, stride=stride, kh=kh, kw=kw, th=th,
            w_out=w_out, cin=cin, cout=cout, h_out=h_out, mask_rows=mask_rows)
        scratch = []

    cparams = pltpu.CompilerParams(
        dimension_semantics=("parallel", "parallel"),
        vmem_limit_bytes=vmem_limit)

    # ---- pass 1: conv + bias, plus per-tile channel stats --------------------
    conv_flat, psums = pl.pallas_call(
        conv_kernel,
        out_shape=(jax.ShapeDtypeStruct((n, cout, n_h * m), conv_dtype),
                   jax.ShapeDtypeStruct((n, n_h, cout, 2), jnp.float32)),
        grid_spec=pltpu.PrefetchScalarGridSpec(
            num_scalar_prefetch=0,
            grid=(n, n_h),
            in_specs=[
                # padded image, resident across the row-tile axis (read once
                # per batch; next batch's fetch overlaps this batch's compute)
                pl.BlockSpec((1, hp, wp, cin), lambda b, t: (b, 0, 0, 0)),
                w_spec,
                pl.BlockSpec((cout, 1), lambda b, t: (0, 0)),
            ],
            out_specs=[
                pl.BlockSpec((1, cout, m), lambda b, t: (b, 0, t)),
                pl.BlockSpec((1, 1, cout, 2), lambda b, t: (b, t, 0, 0)),
            ],
            scratch_shapes=scratch),
        compiler_params=cparams,
    )(x_pad, w_arr, b2)
    # TODO(synk): for very large images on v7x (64 MiB VMEM/TC) the resident
    # image block should become a manually DMA'd halo slab (memory_space=
    # pl.ANY + pltpu.make_async_copy) so VMEM scales with th instead of H.

    # ---- global batch stats + BN affine folded to (scale, shift), O(Cout) ----
    count = n * h_out * w_out
    s = jnp.sum(psums, axis=(0, 1))                        # (cout, 2)
    mean = s[:, 0] / count
    # TODO(synk): E[x^2]-mean^2 in f32 can lose precision for huge N*H*W; a
    # centered second reduction would be more robust at tighter tolerances.
    var = jnp.maximum(s[:, 1] / count - mean * mean, 0.0)   # biased (train mode)
    scale = (gamma.astype(jnp.float32) * lax.rsqrt(var + eps)).reshape(cout, 1)
    shift = beta.astype(jnp.float32).reshape(cout, 1) - mean.reshape(cout, 1) * scale

    # ---- pass 2: normalize + ReLU, in place, NCHW-major lane-dense output ----
    alias = ({0: 0} if jnp.dtype(conv_dtype) == jnp.dtype(jnp.float32) else {})
    y_flat = pl.pallas_call(
        _bn_relu_kernel,
        out_shape=jax.ShapeDtypeStruct((n, cout, n_h * m), jnp.float32),
        grid_spec=pltpu.PrefetchScalarGridSpec(
            num_scalar_prefetch=0,
            grid=(n, n_h),
            in_specs=[
                pl.BlockSpec((1, cout, m), lambda b, t: (b, 0, t)),
                pl.BlockSpec((cout, 1), lambda b, t: (0, 0)),
                pl.BlockSpec((cout, 1), lambda b, t: (0, 0)),
            ],
            out_specs=pl.BlockSpec((1, cout, m), lambda b, t: (b, 0, t))),
        compiler_params=cparams,
        input_output_aliases=alias,
    )(conv_flat, scale, shift)

    # Final reshape is free (row-major NCHW already); crop only if H was padded
    y = y_flat.reshape(n, cout, h_out_pad, w_out)
    if mask_rows:
        y = y[:, :, :h_out, :]
    return y
    # TODO(synk): BatchNorm2d running_mean/running_var buffer updates (module
    # state side effect) are not modeled; the forward output itself uses
    # train-mode batch statistics, matching the PyTorch module.
    # TODO(synk): stride > 1 uses strided pl.ds loads on the resident block
    # and is not exercised by the demo below.


def _reference(x_nchw, weight, bias, gamma, beta, *, stride=1, padding=1,
               eps=1e-5):
    """Pure-JAX reference (conv -> train-mode BN -> relu) for validation."""
    y = lax.conv_general_dilated(
        x_nchw.astype(jnp.float32), weight.astype(jnp.float32),
        window_strides=(stride, stride),
        padding=[(padding, padding), (padding, padding)],
        dimension_numbers=("NCHW", "OIHW", "NCHW"))
    y = y + bias.reshape(1, -1, 1, 1)
    mean = jnp.mean(y, axis=(0, 2, 3), keepdims=True)
    var = jnp.mean((y - mean) ** 2, axis=(0, 2, 3), keepdims=True)
    y = (y - mean) * lax.rsqrt(var + eps)
    y = y * gamma.reshape(1, -1, 1, 1) + beta.reshape(1, -1, 1, 1)
    return jnp.maximum(y, 0.0)


if __name__ == "__main__":
    # convolution(in_channels=4, out_channels=8, kernel_size=3, stride=1)
    N, C_IN, H, W = 2, 4, 16, 16
    C_OUT, KSZ, STRIDE = 8, 3, 1

    key = jax.random.PRNGKey(0)
    k_x, k_w, k_b = jax.random.split(key, 3)

    x = jax.random.normal(k_x, (N, C_IN, H, W), dtype=jnp.float32)

    fan_in = C_IN * KSZ * KSZ
    bound = 1.0 / (fan_in ** 0.5)
    weight = jax.random.uniform(k_w, (C_OUT, C_IN, KSZ, KSZ),
                                minval=-bound, maxval=bound, dtype=jnp.float32)
    bias = jax.random.uniform(k_b, (C_OUT,), minval=-bound, maxval=bound,
                              dtype=jnp.float32)
    gamma = jnp.ones((C_OUT,), jnp.float32)    # BatchNorm2d weight init
    beta = jnp.zeros((C_OUT,), jnp.float32)    # BatchNorm2d bias init

    fwd = jax.jit(functools.partial(convolution_forward,
                                    stride=STRIDE, padding=1))
    out = jax.block_until_ready(fwd(x, weight, bias, gamma, beta))

    ref = _reference(x, weight, bias, gamma, beta, stride=STRIDE, padding=1)
    assert out.shape == (N, C_OUT, H, W), out.shape
    max_err = float(jnp.max(jnp.abs(out - ref)))
    assert jnp.allclose(out, ref, atol=1e-4, rtol=1e-4), max_err

    print("KERNEL_OK")
</pallas_src>

<mosaic_0001>
module attributes {stable_mosaic.version = 11 : i64} {
  func.func @_bn_relu_kernel(%arg0: i32, %arg1: i32, %arg2: memref<1x8x256xf32, #tpu.memory_space<vmem>>, %arg3: memref<8x1xf32, #tpu.memory_space<vmem>>, %arg4: memref<8x1xf32, #tpu.memory_space<vmem>>, %arg5: memref<1x8x256xf32, #tpu.memory_space<vmem>>) attributes {dimension_semantics = [#tpu.dimension_semantics<parallel>, #tpu.dimension_semantics<parallel>], iteration_bounds = array<i64: 2, 1>, scalar_prefetch = 0 : i64, scratch_operands = 0 : i64, tpu.core_type = #tpu.core_type<tc>, window_params = [{transform_indices = @transform_0, window_bounds = array<i64: 1, 8, 256>}, {pipeline_mode = #tpu.pipeline_mode<synchronous>, transform_indices = @transform_1, window_bounds = array<i64: 8, 1>}, {pipeline_mode = #tpu.pipeline_mode<synchronous>, transform_indices = @transform_2, window_bounds = array<i64: 8, 1>}, {transform_indices = @transform_3, window_bounds = array<i64: 1, 8, 256>}]} {
    %c0 = arith.constant 0 : index
    %c0_0 = arith.constant 0 : index
    %c0_1 = arith.constant 0 : index
    %0 = vector.load %arg2[%c0, %c0_0, %c0_1] : memref<1x8x256xf32, #tpu.memory_space<vmem>>, vector<1x8x256xf32>
    %1 = vector.shape_cast %0 : vector<1x8x256xf32> to vector<8x256xf32>
    %c0_2 = arith.constant 0 : index
    %c0_3 = arith.constant 0 : index
    %2 = vector.load %arg3[%c0_2, %c0_3] : memref<8x1xf32, #tpu.memory_space<vmem>>, vector<8x1xf32>
    %3 = vector.broadcast %2 : vector<8x1xf32> to vector<8x256xf32>
    %4 = arith.mulf %1, %3 : vector<8x256xf32>
    %c0_4 = arith.constant 0 : index
    %c0_5 = arith.constant 0 : index
    %5 = vector.load %arg4[%c0_4, %c0_5] : memref<8x1xf32, #tpu.memory_space<vmem>>, vector<8x1xf32>
    %6 = vector.broadcast %5 : vector<8x1xf32> to vector<8x256xf32>
    %7 = arith.addf %4, %6 : vector<8x256xf32>
    %cst = arith.constant 0.000000e+00 : f32
    %8 = vector.broadcast %cst : f32 to vector<8x256xf32>
    %9 = arith.maximumf %7, %8 : vector<8x256xf32>
    %c0_6 = arith.constant 0 : index
    %c0_7 = arith.constant 0 : index
    %c0_8 = arith.constant 0 : index
    %10 = vector.load %arg5[%c0_6, %c0_7, %c0_8] : memref<1x8x256xf32, #tpu.memory_space<vmem>>, vector<1x8x256xf32>
    %11 = vector.shape_cast %10 : vector<1x8x256xf32> to vector<8x256xf32>
    %12 = vector.shape_cast %9 : vector<8x256xf32> to vector<1x8x256xf32>
    tpu.vector_store %arg5[%c0_6, %c0_7, %c0_8], %12 {strides = array<i32>} : memref<1x8x256xf32, #tpu.memory_space<vmem>>, vector<1x8x256xf32>,
    return
  }
  func.func @transform_0(%arg0: i32, %arg1: i32) -> (i32, i32, i32) {
    %c0_i32 = arith.constant 0 : i32
    %c0_i32_0 = arith.constant 0 : i32
    return %arg0, %c0_i32, %arg1 : i32, i32, i32
  }
  func.func @transform_1(%arg0: i32, %arg1: i32) -> (i32, i32) {
    %c0_i32 = arith.constant 0 : i32
    %c0_i32_0 = arith.constant 0 : i32
    %c0_i32_1 = arith.constant 0 : i32
    return %c0_i32, %c0_i32_0 : i32, i32
  }
  func.func @transform_2(%arg0: i32, %arg1: i32) -> (i32, i32) {
    %c0_i32 = arith.constant 0 : i32
    %c0_i32_0 = arith.constant 0 : i32
    %c0_i32_1 = arith.constant 0 : i32
    return %c0_i32, %c0_i32_0 : i32, i32
  }
  func.func @transform_3(%arg0: i32, %arg1: i32) -> (i32, i32, i32) {
    %c0_i32 = arith.constant 0 : i32
    %c0_i32_0 = arith.constant 0 : i32
    return %arg0, %c0_i32, %arg1 : i32, i32, i32
  }
}

module attributes {stable_mosaic.version = 11 : i64} {
  func.func @_conv_taps_kernel(%arg0: i32, %arg1: i32, %arg2: memref<1x18x18x4xf32, #tpu.memory_space<vmem>>, %arg3: memref<9x8x4xf32, #tpu.memory_space<vmem>>, %arg4: memref<8x1xf32, #tpu.memory_space<vmem>>, %arg5: memref<1x8x256xf32, #tpu.memory_space<vmem>>, %arg6: memref<1x1x8x2xf32, #tpu.memory_space<vmem>>) attributes {dimension_semantics = [#tpu.dimension_semantics<parallel>, #tpu.dimension_semantics<parallel>], iteration_bounds = array<i64: 2, 1>, scalar_prefetch = 0 : i64, scratch_operands = 0 : i64, tpu.core_type = #tpu.core_type<tc>, window_params = [{transform_indices = @transform_0, window_bounds = array<i64: 1, 18, 18, 4>}, {pipeline_mode = #tpu.pipeline_mode<synchronous>, transform_indices = @transform_1, window_bounds = array<i64: 9, 8, 4>}, {pipeline_mode = #tpu.pipeline_mode<synchronous>, transform_indices = @transform_2, window_bounds = array<i64: 8, 1>}, {transform_indices = @transform_3, window_bounds = array<i64: 1, 8, 256>}, {transform_indices = @transform_4, window_bounds = array<i64: 1, 1, 8, 2>}]} {
    %c16_i32 = arith.constant 16 : i32
    %0 = arith.muli %arg1, %c16_i32 : i32
    %1 = tpu.assume_multiple %0, 16 : i32
    %cst = arith.constant 0.000000e+00 : f32
    %2 = vector.broadcast %cst : f32 to vector<8x256xf32>
    %c0_i32 = arith.constant 0 : i32
    %3 = arith.addi %1, %c0_i32 : i32
    %c0 = arith.constant 0 : index
    %4 = arith.index_cast %3 : i32 to index
    %c0_0 = arith.constant 0 : index
    %c0_1 = arith.constant 0 : index
    %5 = vector.load %arg2[%c0, %4, %c0_0, %c0_1] : memref<1x18x18x4xf32, #tpu.memory_space<vmem>>, vector<1x16x16x4xf32>
    %6 = vector.shape_cast %5 : vector<1x16x16x4xf32> to vector<16x16x4xf32>
    %c0_2 = arith.constant 0 : index
    %c0_3 = arith.constant 0 : index
    %c0_4 = arith.constant 0 : index
    %7 = vector.load %arg3[%c0_2, %c0_3, %c0_4] : memref<9x8x4xf32, #tpu.memory_space<vmem>>, vector<1x8x4xf32>
    %8 = vector.shape_cast %7 : vector<1x8x4xf32> to vector<8x4xf32>
    %9 = vector.shape_cast %6 : vector<16x16x4xf32> to vector<256x4xf32>
    %cst_5 = arith.constant dense<0.000000e+00> : vector<8x256xf32>
    %10 = tpu.matmul %8, %9, %cst_5 {dimension_numbers = #tpu.dot_dimension_numbers<[1], [1], [0], [0], [0, 0, 1, 0], [], []>} : vector<8x4xf32>, vector<256x4xf32>, vector<8x256xf32> -> vector<8x256xf32>
    %11 = arith.addf %2, %10 : vector<8x256xf32>
    %c0_i32_6 = arith.constant 0 : i32
    %12 = arith.addi %1, %c0_i32_6 : i32
    %c0_7 = arith.constant 0 : index
    %13 = arith.index_cast %12 : i32 to index
    %c1 = arith.constant 1 : index
    %c0_8 = arith.constant 0 : index
    %14 = vector.load %arg2[%c0_7, %13, %c1, %c0_8] : memref<1x18x18x4xf32, #tpu.memory_space<vmem>>, vector<1x16x16x4xf32>
    %15 = vector.shape_cast %14 : vector<1x16x16x4xf32> to vector<16x16x4xf32>
    %c1_9 = arith.constant 1 : index
    %c0_10 = arith.constant 0 : index
    %c0_11 = arith.constant 0 : index
    %16 = vector.load %arg3[%c1_9, %c0_10, %c0_11] : memref<9x8x4xf32, #tpu.memory_space<vmem>>, vector<1x8x4xf32>
    %17 = vector.shape_cast %16 : vector<1x8x4xf32> to vector<8x4xf32>
    %18 = vector.shape_cast %15 : vector<16x16x4xf32> to vector<256x4xf32>
    %cst_12 = arith.constant dense<0.000000e+00> : vector<8x256xf32>
    %19 = tpu.matmul %17, %18, %cst_12 {dimension_numbers = #tpu.dot_dimension_numbers<[1], [1], [0], [0], [0, 0, 1, 0], [], []>} : vector<8x4xf32>, vector<256x4xf32>, vector<8x256xf32> -> vector<8x256xf32>
    %20 = arith.addf %11, %19 : vector<8x256xf32>
    %c0_i32_13 = arith.constant 0 : i32
    %21 = arith.addi %1, %c0_i32_13 : i32
    %c0_14 = arith.constant 0 : index
    %22 = arith.index_cast %21 : i32 to index
    %c2 = arith.constant 2 : index
    %c0_15 = arith.constant 0 : index
    %23 = vector.load %arg2[%c0_14, %22, %c2, %c0_15] : memref<1x18x18x4xf32, #tpu.memory_space<vmem>>, vector<1x16x16x4xf32>
    %24 = vector.shape_cast %23 : vector<1x16x16x4xf32> to vector<16x16x4xf32>
    %c2_16 = arith.constant 2 : index
    %c0_17 = arith.constant 0 : index
    %c0_18 = arith.constant 0 : index
    %25 = vector.load %arg3[%c2_16, %c0_17, %c0_18] : memref<9x8x4xf32, #tpu.memory_space<vmem>>, vector<1x8x4xf32>
    %26 = vector.shape_cast %25 : vector<1x8x4xf32> to vector<8x4xf32>
    %27 = vector.shape_cast %24 : vector<16x16x4xf32> to vector<256x4xf32>
    %cst_19 = arith.constant dense<0.000000e+00> : vector<8x256xf32>
    %28 = tpu.matmul %26, %27, %cst_19 {dimension_numbers = #tpu.dot_dimension_numbers<[1], [1], [0], [0], [0, 0, 1, 0], [], []>} : vector<8x4xf32>, vector<256x4xf32>, vector<8x256xf32> -> vector<8x256xf32>
    %29 = arith.addf %20, %28 : vector<8x256xf32>
    %c1_i32 = arith.constant 1 : i32
    %30 = arith.addi %1, %c1_i32 : i32
    %c0_20 = arith.constant 0 : index
    %31 = arith.index_cast %30 : i32 to index
    %c0_21 = arith.constant 0 : index
    %c0_22 = arith.constant 0 : index
    %32 = vector.load %arg2[%c0_20, %31, %c0_21, %c0_22] : memref<1x18x18x4xf32, #tpu.memory_space<vmem>>, vector<1x16x16x4xf32>
    %33 = vector.shape_cast %32 : vector<1x16x16x4xf32> to vector<16x16x4xf32>
    %c3 = arith.constant 3 : index
    %c0_23 = arith.constant 0 : index
    %c0_24 = arith.constant 0 : index
    %34 = vector.load %arg3[%c3, %c0_23, %c0_24] : memref<9x8x4xf32, #tpu.memory_space<vmem>>, vector<1x8x4xf32>
    %35 = vector.shape_cast %34 : vector<1x8x4xf32> to vector<8x4xf32>
    %36 = vector.shape_cast %33 : vector<16x16x4xf32> to vector<256x4xf32>
    %cst_25 = arith.constant dense<0.000000e+00> : vector<8x256xf32>
    %37 = tpu.matmul %35, %36, %cst_25 {dimension_numbers = #tpu.dot_dimension_numbers<[1], [1], [0], [0], [0, 0, 1, 0], [], []>} : vector<8x4xf32>, vector<256x4xf32>, vector<8x256xf32> -> vector<8x256xf32>
    %38 = arith.addf %29, %37 : vector<8x256xf32>
    %c1_i32_26 = arith.constant 1 : i32
    %39 = arith.addi %1, %c1_i32_26 : i32
    %c0_27 = arith.constant 0 : index
    %40 = arith.index_cast %39 : i32 to index
    %c1_28 = arith.constant 1 : index
    %c0_29 = arith.constant 0 : index
    %41 = vector.load %arg2[%c0_27, %40, %c1_28, %c0_29] : memref<1x18x18x4xf32, #tpu.memory_space<vmem>>, vector<1x16x16x4xf32>
    %42 = vector.shape_cast %41 : vector<1x16x16x4xf32> to vector<16x16x4xf32>
    %c4 = arith.constant 4 : index
    %c0_30 = arith.constant 0 : index
    %c0_31 = arith.constant 0 : index
    %43 = vector.load %arg3[%c4, %c0_30, %c0_31] : memref<9x8x4xf32, #tpu.memory_space<vmem>>, vector<1x8x4xf32>
    %44 = vector.shape_cast %43 : vector<1x8x4xf32> to vector<8x4xf32>
    %45 = vector.shape_cast %42 : vector<16x16x4xf32> to vector<256x4xf32>
    %cst_32 = arith.constant dense<0.000000e+00> : vector<8x256xf32>
    %46 = tpu.matmul %44, %45, %cst_32 {dimension_numbers = #tpu.dot_dimension_numbers<[1], [1], [0], [0], [0, 0, 1, 0], [], []>} : vector<8x4xf32>, vector<256x4xf32>, vector<8x256xf32> -> vector<8x256xf32>
    %47 = arith.addf %38, %46 : vector<8x256xf32>
    %c1_i32_33 = arith.constant 1 : i32
    %48 = arith.addi %1, %c1_i32_33 : i32
    %c0_34 = arith.constant 0 : index
    %49 = arith.index_cast %48 : i32 to index
    %c2_35 = arith.constant 2 : index
    %c0_36 = arith.constant 0 : index
    %50 = vector.load %arg2[%c0_34, %49, %c2_35, %c0_36] : memref<1x18x18x4xf32, #tpu.memory_space<vmem>>, vector<1x16x16x4xf32>
    %51 = vector.shape_cast %50 : vector<1x16x16x4xf32> to vector<16x16x4xf32>
    %c5 = arith.constant 5 : index
    %c0_37 = arith.constant 0 : index
    %c0_38 = arith.constant 0 : index
    %52 = vector.load %arg3[%c5, %c0_37, %c0_38] : memref<9x8x4xf32, #tpu.memory_space<vmem>>, vector<1x8x4xf32>
    %53 = vector.shape_cast %52 : vector<1x8x4xf32> to vector<8x4xf32>
    %54 = vector.shape_cast %51 : vector<16x16x4xf32> to vector<256x4xf32>
    %cst_39 = arith.constant dense<0.000000e+00> : vector<8x256xf32>
    %55 = tpu.matmul %53, %54, %cst_39 {dimension_numbers = #tpu.dot_dimension_numbers<[1], [1], [0], [0], [0, 0, 1, 0], [], []>} : vector<8x4xf32>, vector<256x4xf32>, vector<8x256xf32> -> vector<8x256xf32>
    %56 = arith.addf %47, %55 : vector<8x256xf32>
    %c2_i32 = arith.constant 2 : i32
    %57 = arith.addi %1, %c2_i32 : i32
    %c0_40 = arith.constant 0 : index
    %58 = arith.index_cast %57 : i32 to index
    %c0_41 = arith.constant 0 : index
    %c0_42 = arith.constant 0 : index
    %59 = vector.load %arg2[%c0_40, %58, %c0_41, %c0_42] : memref<1x18x18x4xf32, #tpu.memory_space<vmem>>, vector<1x16x16x4xf32>
    %60 = vector.shape_cast %59 : vector<1x16x16x4xf32> to vector<16x16x4xf32>
    %c6 = arith.constant 6 : index
    %c0_43 = arith.constant 0 : index
    %c0_44 = arith.constant 0 : index
    %61 = vector.load %arg3[%c6, %c0_43, %c0_44] : memref<9x8x4xf32, #tpu.memory_space<vmem>>, vector<1x8x4xf32>
    %62 = vector.shape_cast %61 : vector<1x8x4xf32> to vector<8x4xf32>
    %63 = vector.shape_cast %60 : vector<16x16x4xf32> to vector<256x4xf32>
    %cst_45 = arith.constant dense<0.000000e+00> : vector<8x256xf32>
    %64 = tpu.matmul %62, %63, %cst_45 {dimension_numbers = #tpu.dot_dimension_numbers<[1], [1], [0], [0], [0, 0, 1, 0], [], []>} : vector<8x4xf32>, vector<256x4xf32>, vector<8x256xf32> -> vector<8x256xf32>
    %65 = arith.addf %56, %64 : vector<8x256xf32>
    %c2_i32_46 = arith.constant 2 : i32
    %66 = arith.addi %1, %c2_i32_46 : i32
    %c0_47 = arith.constant 0 : index
    %67 = arith.index_cast %66 : i32 to index
    %c1_48 = arith.constant 1 : index
    %c0_49 = arith.constant 0 : index
    %68 = vector.load %arg2[%c0_47, %67, %c1_48, %c0_49] : memref<1x18x18x4xf32, #tpu.memory_space<vmem>>, vector<1x16x16x4xf32>
    %69 = vector.shape_cast %68 : vector<1x16x16x4xf32> to vector<16x16x4xf32>
    %c7 = arith.constant 7 : index
    %c0_50 = arith.constant 0 : index
    %c0_51 = arith.constant 0 : index
    %70 = vector.load %arg3[%c7, %c0_50, %c0_51] : memref<9x8x4xf32, #tpu.memory_space<vmem>>, vector<1x8x4xf32>
    %71 = vector.shape_cast %70 : vector<1x8x4xf32> to vector<8x4xf32>
    %72 = vector.shape_cast %69 : vector<16x16x4xf32> to vector<256x4xf32>
    %cst_52 = arith.constant dense<0.000000e+00> : vector<8x256xf32>
    %73 = tpu.matmul %71, %72, %cst_52 {dimension_numbers = #tpu.dot_dimension_numbers<[1], [1], [0], [0], [0, 0, 1, 0], [], []>} : vector<8x4xf32>, vector<256x4xf32>, vector<8x256xf32> -> vector<8x256xf32>
    %74 = arith.addf %65, %73 : vector<8x256xf32>
    %c2_i32_53 = arith.constant 2 : i32
    %75 = arith.addi %1, %c2_i32_53 : i32
    %c0_54 = arith.constant 0 : index
    %76 = arith.index_cast %75 : i32 to index
    %c2_55 = arith.constant 2 : index
    %c0_56 = arith.constant 0 : index
    %77 = vector.load %arg2[%c0_54, %76, %c2_55, %c0_56] : memref<1x18x18x4xf32, #tpu.memory_space<vmem>>, vector<1x16x16x4xf32>
    %78 = vector.shape_cast %77 : vector<1x16x16x4xf32> to vector<16x16x4xf32>
    %c8 = arith.constant 8 : index
    %c0_57 = arith.constant 0 : index
    %c0_58 = arith.constant 0 : index
    %79 = vector.load %arg3[%c8, %c0_57, %c0_58] : memref<9x8x4xf32, #tpu.memory_space<vmem>>, vector<1x8x4xf32>
    %80 = vector.shape_cast %79 : vector<1x8x4xf32> to vector<8x4xf32>
    %81 = vector.shape_cast %78 : vector<16x16x4xf32> to vector<256x4xf32>
    %cst_59 = arith.constant dense<0.000000e+00> : vector<8x256xf32>
    %82 = tpu.matmul %80, %81, %cst_59 {dimension_numbers = #tpu.dot_dimension_numbers<[1], [1], [0], [0], [0, 0, 1, 0], [], []>} : vector<8x4xf32>, vector<256x4xf32>, vector<8x256xf32> -> vector<8x256xf32>
    %83 = arith.addf %74, %82 : vector<8x256xf32>
    %c0_60 = arith.constant 0 : index
    %c0_61 = arith.constant 0 : index
    %84 = vector.load %arg4[%c0_60, %c0_61] : memref<8x1xf32, #tpu.memory_space<vmem>>, vector<8x1xf32>
    %85 = vector.broadcast %84 : vector<8x1xf32> to vector<8x256xf32>
    %86 = arith.addf %83, %85 : vector<8x256xf32>
    %c0_62 = arith.constant 0 : index
    %c0_63 = arith.constant 0 : index
    %c0_64 = arith.constant 0 : index
    %87 = vector.load %arg5[%c0_62, %c0_63, %c0_64] : memref<1x8x256xf32, #tpu.memory_space<vmem>>, vector<1x8x256xf32>
    %88 = vector.shape_cast %87 : vector<1x8x256xf32> to vector<8x256xf32>
    %89 = vector.shape_cast %86 : vector<8x256xf32> to vector<1x8x256xf32>
    tpu.vector_store %arg5[%c0_62, %c0_63, %c0_64], %89 {strides = array<i32>} : memref<1x8x256xf32, #tpu.memory_space<vmem>>, vector<1x8x256xf32>,
    %cst_65 = arith.constant dense<0.000000e+00> : vector<8xf32>
    %90 = vector.multi_reduction <add>, %86, %cst_65 [1] : vector<8x256xf32> to vector<8xf32>
    %91 = vector.shape_cast %90 : vector<8xf32> to vector<8x1xf32>
    %c0_66 = arith.constant 0 : index
    %c0_67 = arith.constant 0 : index
    %c0_68 = arith.constant 0 : index
    %c0_69 = arith.constant 0 : index
    %92 = vector.load %arg6[%c0_66, %c0_67, %c0_68, %c0_69] : memref<1x1x8x2xf32, #tpu.memory_space<vmem>>, vector<1x1x8x1xf32>
    %93 = vector.shape_cast %92 : vector<1x1x8x1xf32> to vector<8x1xf32>
    %94 = vector.shape_cast %91 : vector<8x1xf32> to vector<1x1x8x1xf32>
    tpu.vector_store %arg6[%c0_66, %c0_67, %c0_68, %c0_69], %94 {strides = array<i32>} : memref<1x1x8x2xf32, #tpu.memory_space<vmem>>, vector<1x1x8x1xf32>,
    %95 = arith.mulf %86, %86 : vector<8x256xf32>
    %cst_70 = arith.constant dense<0.000000e+00> : vector<8xf32>
    %96 = vector.multi_reduction <add>, %95, %cst_70 [1] : vector<8x256xf32> to vector<8xf32>
    %97 = vector.shape_cast %96 : vector<8xf32> to vector<8x1xf32>
    %c0_71 = arith.constant 0 : index
    %c0_72 = arith.constant 0 : index
    %c0_73 = arith.constant 0 : index
    %c1_74 = arith.constant 1 : index
    %98 = vector.load %arg6[%c0_71, %c0_72, %c0_73, %c1_74] : memref<1x1x8x2xf32, #tpu.memory_space<vmem>>, vector<1x1x8x1xf32>
    %99 = vector.shape_cast %98 : vector<1x1x8x1xf32> to vector<8x1xf32>
    %100 = vector.shape_cast %97 : vector<8x1xf32> to vector<1x1x8x1xf32>
    tpu.vector_store %arg6[%c0_71, %c0_72, %c0_73, %c1_74], %100 {strides = array<i32>} : memref<1x1x8x2xf32, #tpu.memory_space<vmem>>, vector<1x1x8x1xf32>,
    return
  }
  func.func @transform_0(%arg0: i32, %arg1: i32) -> (i32, i32, i32, i32) {
    %c0_i32 = arith.constant 0 : i32
    %c0_i32_0 = arith.constant 0 : i32
    %c0_i32_1 = arith.constant 0 : i32
    %c0_i32_2 = arith.constant 0 : i32
    return %arg0, %c0_i32, %c0_i32_0, %c0_i32_1 : i32, i32, i32, i32
  }
  func.func @transform_1(%arg0: i32, %arg1: i32) -> (i32, i32, i32) {
    %c0_i32 = arith.constant 0 : i32
    %c0_i32_0 = arith.constant 0 : i32
    %c0_i32_1 = arith.constant 0 : i32
    %c0_i32_2 = arith.constant 0 : i32
    return %c0_i32, %c0_i32_0, %c0_i32_1 : i32, i32, i32
  }
  func.func @transform_2(%arg0: i32, %arg1: i32) -> (i32, i32) {
    %c0_i32 = arith.constant 0 : i32
    %c0_i32_0 = arith.constant 0 : i32
    %c0_i32_1 = arith.constant 0 : i32
    return %c0_i32, %c0_i32_0 : i32, i32
  }
  func.func @transform_3(%arg0: i32, %arg1: i32) -> (i32, i32, i32) {
    %c0_i32 = arith.constant 0 : i32
    %c0_i32_0 = arith.constant 0 : i32
    return %arg0, %c0_i32, %arg1 : i32, i32, i32
  }
  func.func @transform_4(%arg0: i32, %arg1: i32) -> (i32, i32, i32, i32) {
    %c0_i32 = arith.constant 0 : i32
    %c0_i32_0 = arith.constant 0 : i32
    %c0_i32_1 = arith.constant 0 : i32
    return %arg0, %arg1, %c0_i32, %c0_i32_0 : i32, i32, i32, i32
  }
}

</mosaic_0001>

<llo_original>
// kernel: convolution_forward.3
$region0: #{convolution_forward.3}
  #allocation0 [shape = 'u32[]', space=smem, size = 0x4, offset = 0x4, fixed_abs, tag = 'smem constant byte address 0x4 - core index']
  #allocation1 [shape = 'u32[72,128]{1,0:T(1,128)}', space=vmem, size = 0x9000, scoped, tag = 'internal scratch']
  %s0 = inlined_call_operand.vmem [shape: f32[2,8,256], index: 0, kind: input, shape index: {}, may-alias: {0,3}]
  %s1 = inlined_call_operand.vmem [shape: f32[8,1], index: 1, kind: input, shape index: {}]
  %s2 = inlined_call_operand.vmem [shape: f32[8,1], index: 2, kind: input, shape index: {}]
  %s3 = inlined_call_operand.vmem [shape: f32[2,8,256], index: 3, kind: output, shape index: {}, may-alias: {0,3}]
  %s4 = sld [smem:[#allocation0]]
  $region45: #{convolution_forward.3} parent=0
    _
  %s6 = ssub.s32 1, %s4
  %s7 = scalar_select 0, %s6, %s4
  loop: start=0, step=1, limit=4
  $region2: #{convolution_forward.3} parent=0 // loop_pre_header
    _
  $region3: #{convolution_forward.3} parent=0 // loop_header
    %s9 = sphi 0, %s13
    %p10 = scmp.ge.s32.totalorder %s9, 4
    %s16 = sphi 0, %s28
    %s17 = sphi 0, %s24
    %s18 = sphi 0, %s16
    %s19 = sphi 0, %s17
    %s20 = sphi 0, %s18
    %s21 = sphi 0, %s19
    %s33 = sphi 0, %s35
    %s36 = sphi 0, %s33
    %s37 = sphi 0, %s36
    %s53 = sphi 0, %s37
    %s57 = sphi 0, %s57
    %s59 = sphi 0, %s57
    %s60 = sphi 0, %s59
    %s74 = sphi 0, %s60
    %s78 = sphi 0, %s78
    %s80 = sphi 0, %s78
    %s81 = sphi 0, %s80
    %s95 = sphi 0, %s81
    %s103 = sphi 0, %s105
    %s106 = sphi 0, %s103
    %s107 = sphi 0, %s106
    %s123 = sphi 0, %s107
  $region4: #{convolution_forward.3} parent=0 // loop_header_branch
    %12 = sbr.rel (%p10) target = $region8
  $region5: #{convolution_forward.3} parent=0 // loop_body
    %s14 = ssub.s32 %s9, 1
    %s15 = ssub.s32 %s9, 2
    %s22 = sadd.s32 1, %s17
    %p23 = scmp.ge.s32.totalorder %s22, 1
    %s24 = scalar_select %p23, 0, %s22
    %s25 = sadd.s32 1, %s16
    %s26 = scalar_select %p23, %s25, %s16
    %p27 = scmp.ge.s32.totalorder %s26, 2
    %s28 = scalar_select %p27, 0, %s26
    %s29 = ssub.s32 %s16, %s28
    %s30 = ssub.s32 %s17, %s24
    %s31 = sor.u32 %s29, %s30
    %p32 = scmp.eq.s32.totalorder %s31, 0
    %s34 = sadd.s32 %s33, 1
    %s35 = scalar_select %p32, %s33, %s34
    %p38 = pneg %p32
    %p39 = scmp.eq.s32.totalorder %s9, 1
    %p40 = por %p38, %p39
    %p41 = scmp.ne.s32.totalorder %s33, %s36
    %p42 = scmp.eq.s32.totalorder %s9, 0
    %p43 = por %p41, %p42
    %p44 = scmp.ne.s32.totalorder %s33, %s36
    %p45 = scmp.eq.s32.totalorder %s14, 1
    %p46 = por %p44, %p45
    %p47 = scmp.ne.s32.totalorder %s36, %s37
    %p48 = scmp.eq.s32.totalorder %s14, 0
    %p49 = por %p47, %p48
    %p50 = scmp.ne.s32.totalorder %s36, %s37
    %p51 = scmp.eq.s32.totalorder %s15, 1
    %p52 = por %p50, %p51
    %p54 = scmp.ne.s32.totalorder %s37, %s53
    %p55 = scmp.eq.s32.totalorder %s15, 0
    %p56 = por %p54, %p55
    %s58 = sadd.s32 %s57, 1
    %p61 = scmp.eq.s32.totalorder %s9, 1
    %p62 = scmp.ne.s32.totalorder %s57, %s59
    %p63 = scmp.eq.s32.totalorder %s9, 0
    %p64 = por %p62, %p63
    %p65 = scmp.ne.s32.totalorder %s57, %s59
    %p66 = scmp.eq.s32.totalorder %s14, 1
    %p67 = por %p65, %p66
    %p68 = scmp.ne.s32.totalorder %s59, %s60
    %p69 = scmp.eq.s32.totalorder %s14, 0
    %p70 = por %p68, %p69
    %p71 = scmp.ne.s32.totalorder %s59, %s60
    %p72 = scmp.eq.s32.totalorder %s15, 1
    %p73 = por %p71, %p72
    %p75 = scmp.ne.s32.totalorder %s60, %s74
    %p76 = scmp.eq.s32.totalorder %s15, 0
    %p77 = por %p75, %p76
    %s79 = sadd.s32 %s78, 1
    %p82 = scmp.eq.s32.totalorder %s9, 1
    %p83 = scmp.ne.s32.totalorder %s78, %s80
    %p84 = scmp.eq.s32.totalorder %s9, 0
    %p85 = por %p83, %p84
    %p86 = scmp.ne.s32.totalorder %s78, %s80
    %p87 = scmp.eq.s32.totalorder %s14, 1
    %p88 = por %p86, %p87
    %p89 = scmp.ne.s32.totalorder %s80, %s81
    %p90 = scmp.eq.s32.totalorder %s14, 0
    %p91 = por %p89, %p90
    %p92 = scmp.ne.s32.totalorder %s80, %s81
    %p93 = scmp.eq.s32.totalorder %s15, 1
    %p94 = por %p92, %p93
    %p96 = scmp.ne.s32.totalorder %s81, %s95
    %p97 = scmp.eq.s32.totalorder %s15, 0
    %p98 = por %p96, %p97
    %s99 = ssub.s32 %s16, %s28
    %s100 = ssub.s32 %s17, %s24
    %s101 = sor.u32 %s99, %s100
    %p102 = scmp.eq.s32.totalorder %s101, 0
    %s104 = sadd.s32 %s103, 1
    %s105 = scalar_select %p102, %s103, %s104
    %p108 = pneg %p102
    %p109 = scmp.eq.s32.totalorder %s9, 1
    %p110 = por %p108, %p109
    %p111 = scmp.ne.s32.totalorder %s103, %s106
    %p112 = scmp.eq.s32.totalorder %s9, 0
    %p113 = por %p111, %p112
    %p114 = scmp.ne.s32.totalorder %s103, %s106
    %p115 = scmp.eq.s32.totalorder %s14, 1
    %p116 = por %p114, %p115
    %p117 = scmp.ne.s32.totalorder %s106, %s107
    %p118 = scmp.eq.s32.totalorder %s14, 0
    %p119 = por %p117, %p118
    %p120 = scmp.ne.s32.totalorder %s106, %s107
    %p121 = scmp.eq.s32.totalorder %s15, 1
    %p122 = por %p120, %p121
    %p124 = scmp.ne.s32.totalorder %s107, %s123
    %p125 = scmp.eq.s32.totalorder %s15, 0
    %p126 = por %p124, %p125
    %p127 = scmp.le.s32.totalorder 1, %s9
    %p128 = scmp.lt.s32.totalorder %s9, 3
    %p129 = pnand %p127, %p128
    %p130 = pneg %p129
    // Predicated region
    $region9: #{convolution_forward.3} parent=5 // pred_check
      _
    $region10: #{convolution_forward.3} parent=5 // pred_check_branch
      %132 = sbr.rel (%p129) target = $region12
    $region11: #{convolution_forward.3} parent=5 // pred_region
      %s133 = ssub.s32 %s9, 1
      // Predicated region
      $region13: #{convolution_forward.3} parent=11 // pred_check
        %p134 = pneg %p70
      $region14: #{convolution_forward.3} parent=11 // pred_check_branch
        %136 = sbr.rel (%p134) target = $region16
      $region15: #{convolution_forward.3} parent=11 // pred_region
        _
      $region16: #{convolution_forward.3} parent=11 // pred_fallthru
        _
      // Predicated region
      $region17: #{convolution_forward.3} parent=11 // pred_check
        %p137 = pneg %p91
      $region18: #{convolution_forward.3} parent=11 // pred_check_branch
        %139 = sbr.rel (%p137) target = $region20
      $region19: #{convolution_forward.3} parent=11 // pred_region
        _
      $region20: #{convolution_forward.3} parent=11 // pred_fallthru
        _
    $region12: #{convolution_forward.3} parent=5 // pred_fallthru
      _
    %p140 = scmp.lt.s32.totalorder %s9, 2
    // Predicated region
    $region21: #{convolution_forward.3} parent=5 // pred_check
      %p141 = pneg %p140
    $region22: #{convolution_forward.3} parent=5 // pred_check_branch
      %143 = sbr.rel (%p141) target = $region24
    $region23: #{convolution_forward.3} parent=5 // pred_region
      // Predicated region
      $region25: #{convolution_forward.3} parent=23 // pred_check
        %p144 = pneg %p43
      $region26: #{convolution_forward.3} parent=23 // pred_check_branch
        %146 = sbr.rel (%p144) target = $region28
      $region27: #{convolution_forward.3} parent=23 // pred_region
        %s147 = smul.u32 2, %s17
        %p148 = scmp.lt.s32.totalorder %s16, 1
        %s149 = scalar_select %p148, %s16, 1
        %p150 = scmp.lt.s32.totalorder %s147, 1
        %s151 = scalar_select %p150, %s147, 1
        %s152 = smul.addr %s149, 2
        %s153 = sadd.s32 %s151, %s152
        %s154 = smul.addr %s153, 8
        %s155 = scalar_lea.vmem %s0, %s154
        %s156 = smul.u32 2, %s17
      $region28: #{convolution_forward.3} parent=23 // pred_fallthru
        _
    $region24: #{convolution_forward.3} parent=5 // pred_fallthru
      _
    %p157 = scmp.le.s32.totalorder 1, %s9
    %p158 = scmp.lt.s32.totalorder %s9, 3
    %p159 = pnand %p157, %p158
    %p160 = pneg %p159
    // Predicated region
    $region29: #{convolution_forward.3} parent=5 // pred_check
      _
    $region30: #{convolution_forward.3} parent=5 // pred_check_branch
      %162 = sbr.rel (%p159) target = $region32
    $region31: #{convolution_forward.3} parent=5 // pred_region
      %s163 = ssub.s32 %s9, 1
      %s164 = smul.u32 2, %s19
      %p165 = scmp.lt.s32.totalorder %s18, 1
      %s166 = scalar_select %p165, %s18, 1
      %p167 = scmp.lt.s32.totalorder %s164, 1
      %s168 = scalar_select %p167, %s164, 1
      %s169 = smul.addr %s166, 2
      %s170 = sadd.s32 %s168, %s169
      %s171 = smul.addr %s170, 8
      %s172 = scalar_lea.vmem %s0, %s171
      %p173 = pneg %p49
      %p174 = pneg %p46
      %p175 = pneg %p70
      %p176 = pneg %p67
      %p177 = pneg %p91
      %p178 = pneg %p88
      %p179 = pneg %p119
      %p180 = pneg %p116
      %s181 = smul.u32 2, %s19
      %p182 = scmp.lt.s32.totalorder %s18, 1
      %s183 = scalar_select %p182, %s18, 1
      %p184 = scmp.lt.s32.totalorder %s181, 1
      %s185 = scalar_select %p184, %s181, 1
      %s186 = smul.addr %s183, 2
      %s187 = sadd.s32 %s185, %s186
      %s188 = smul.addr %s187, 8
      %s189 = scalar_lea.vmem %s3, %s188
      %s190 = smul.u32 2, %s19
      %p191 = scmp.lt.s32.totalorder %s18, 1
      %s192 = scalar_select %p191, %s18, 1
      %p193 = scmp.lt.s32.totalorder %s190, 1
      %s194 = scalar_select %p193, %s190, 1
      %s195 = smul.addr %s192, 2
      %s196 = sadd.s32 %s194, %s195
      %s197 = smul.addr %s196, 8
      %s198 = scalar_lea.vmem %s0, %s197
      %s199 = smul.u32 2, %s19
      %s200 = smul.u32 2, %s19
      %p201 = scmp.lt.s32.totalorder %s18, 1
      %s202 = scalar_select %p201, %s18, 1
      %p203 = scmp.lt.s32.totalorder %s200, 1
      %s204 = scalar_select %p203, %s200, 1
      %s205 = smul.addr %s202, 2
      %s206 = sadd.s32 %s204, %s205
      %s207 = smul.addr %s206, 8
      %s208 = scalar_lea.vmem %s3, %s207
      %s209 = smul.u32 2, %s19
      %v210 = vld [vmem:[%s198] sm:$0xff]
      %v211 = vld [vmem:[%s198 + $0x8] sm:$0xff]
      %v212 = vld [vmem:[%s1] sm:$0xff]
      %214 = vset.pattern.permute.xlu0 0
      %215 = vperm.xlu0 %214, %v212
      %v216 = vpop.permute.xlu0 %215
      %v218 = vmul.f32 %v210, %v216
      %v219 = vmul.f32 %v211, %v216
      %v220 = vld [vmem:[%s2] sm:$0xff]
      %222 = vset.pattern.permute.xlu0 0
      %223 = vperm.xlu0 %222, %v220
      %v224 = vpop.permute.xlu0 %223
      %v226 = vadd.f32 %v218, %v224
      %v227 = vadd.f32 %v219, %v224
      %v228 = vmax.f32 %v226, 0.0
      %v229 = vmax.f32 %v227, 0.0
      %230 = vst [vmem:[%s208] sm:$0xff] %v228
      %231 = vst [vmem:[%s208 + $0x8] sm:$0xff] %v229
      %s232 = smul.u32 2, %s19
      %p233 = scmp.lt.s32.totalorder %s18, 1
      %s234 = scalar_select %p233, %s18, 1
      %p235 = scmp.lt.s32.totalorder %s232, 1
      %s236 = scalar_select %p235, %s232, 1
      %s237 = smul.addr %s234, 2
      %s238 = sadd.s32 %s236, %s237
      %s239 = smul.addr %s238, 8
      %s240 = scalar_lea.vmem %s3, %s239
      // Predicated region
      $region33: #{convolution_forward.3} parent=31 // pred_check
        %p241 = pneg %p116
      $region34: #{convolution_forward.3} parent=31 // pred_check_branch
        %243 = sbr.rel (%p241) target = $region36
      $region35: #{convolution_forward.3} parent=31 // pred_region
        %s244 = smul.u32 2, %s19
      $region36: #{convolution_forward.3} parent=31 // pred_fallthru
        _
    $region32: #{convolution_forward.3} parent=5 // pred_fallthru
      _
    %p245 = scmp.le.s32.totalorder 2, %s9
    // Predicated region
    $region37: #{convolution_forward.3} parent=5 // pred_check
      %p246 = pneg %p245
    $region38: #{convolution_forward.3} parent=5 // pred_check_branch
      %248 = sbr.rel (%p246) target = $region40
    $region39: #{convolution_forward.3} parent=5 // pred_region
      %s249 = ssub.s32 %s9, 2
      // Predicated region
      $region41: #{convolution_forward.3} parent=39 // pred_check
        %p250 = pneg %p122
      $region42: #{convolution_forward.3} parent=39 // pred_check_branch
        %252 = sbr.rel (%p250) target = $region44
      $region43: #{convolution_forward.3} parent=39 // pred_region
        %s253 = smul.u32 2, %s21
        %p254 = scmp.lt.s32.totalorder %s20, 1
        %s255 = scalar_select %p254, %s20, 1
        %p256 = scmp.lt.s32.totalorder %s253, 1
        %s257 = scalar_select %p256, %s253, 1
        %s258 = smul.addr %s255, 2
        %s259 = sadd.s32 %s257, %s258
        %s260 = smul.addr %s259, 8
        %s261 = scalar_lea.vmem %s3, %s260
      $region44: #{convolution_forward.3} parent=39 // pred_fallthru
        _
    $region40: #{convolution_forward.3} parent=5 // pred_fallthru
      _
  $region6: #{convolution_forward.3} parent=0 // loop_footer
    %s13 = sadd.s32 1, %s9
  $region7: #{convolution_forward.3} parent=0 // loop_footer_branch
    %8 = sbr.rel target = $region3
  $region8: #{convolution_forward.3} parent=0 // loop_exit
    _

// kernel: convolution_forward.2
$region0: #{convolution_forward.2}
  #allocation0 [shape = 'u32[]', space=smem, size = 0x4, offset = 0x4, fixed_abs, tag = 'smem constant byte address 0x4 - core index']
  #allocation1 [shape = 'u32[72,128]{1,0:T(1,128)}', space=vmem, size = 0x9000, scoped, tag = 'internal scratch']
  %s0 = inlined_call_operand.vmem [shape: f32[2,18,18,4], index: 0, kind: input, shape index: {}]
  %s1 = inlined_call_operand.vmem [shape: f32[9,8,4], index: 1, kind: input, shape index: {}]
  %s2 = inlined_call_operand.vmem [shape: f32[8,1], index: 2, kind: input, shape index: {}]
  %s3 = inlined_call_operand.vmem [shape: f32[2,8,256], index: 3, kind: output, shape index: {0}]
  %s4 = inlined_call_operand.vmem [shape: f32[2,1,8,2], index: 4, kind: output, shape index: {1}]
  %5 = xla_tuple %s3, %s4
  %s6 = sld [smem:[#allocation0]]
  $region53: #{convolution_forward.2} parent=0
    _
  %s8 = ssub.s32 1, %s6
  %s9 = scalar_select 0, %s8, %s6
  loop: start=0, step=1, limit=4
  $region2: #{convolution_forward.2} parent=0 // loop_pre_header
    _
  $region3: #{convolution_forward.2} parent=0 // loop_header
    %s11 = sphi 0, %s15
    %p12 = scmp.ge.s32.totalorder %s11, 4
    %s18 = sphi 0, %s30
    %s19 = sphi 0, %s26
    %s20 = sphi 0, %s18
    %s21 = sphi 0, %s19
    %s22 = sphi 0, %s20
    %s23 = sphi 0, %s21
    %s33 = sphi 0, %s35
    %s36 = sphi 0, %s33
    %s37 = sphi 0, %s36
    %s53 = sphi 0, %s37
    %s57 = sphi 0, %s57
    %s59 = sphi 0, %s57
    %s60 = sphi 0, %s59
    %s74 = sphi 0, %s60
    %s78 = sphi 0, %s78
    %s80 = sphi 0, %s78
    %s81 = sphi 0, %s80
    %s95 = sphi 0, %s81
    %s103 = sphi 0, %s105
    %s106 = sphi 0, %s103
    %s107 = sphi 0, %s106
    %s123 = sphi 0, %s107
    %s131 = sphi 0, %s133
    %s134 = sphi 0, %s131
    %s135 = sphi 0, %s134
    %s151 = sphi 0, %s135
  $region4: #{convolution_forward.2} parent=0 // loop_header_branch
    %14 = sbr.rel (%p12) target = $region8
  $region5: #{convolution_forward.2} parent=0 // loop_body
    %s16 = ssub.s32 %s11, 1
    %s17 = ssub.s32 %s11, 2
    %s24 = sadd.s32 1, %s19
    %p25 = scmp.ge.s32.totalorder %s24, 1
    %s26 = scalar_select %p25, 0, %s24
    %s27 = sadd.s32 1, %s18
    %s28 = scalar_select %p25, %s27, %s18
    %p29 = scmp.ge.s32.totalorder %s28, 2
    %s30 = scalar_select %p29, 0, %s28
    %s31 = ssub.s32 %s18, %s30
    %p32 = scmp.eq.s32.totalorder %s31, 0
    %s34 = sadd.s32 %s33, 1
    %s35 = scalar_select %p32, %s33, %s34
    %p38 = pneg %p32
    %p39 = scmp.eq.s32.totalorder %s11, 1
    %p40 = por %p38, %p39
    %p41 = scmp.ne.s32.totalorder %s33, %s36
    %p42 = scmp.eq.s32.totalorder %s11, 0
    %p43 = por %p41, %p42
    %p44 = scmp.ne.s32.totalorder %s33, %s36
    %p45 = scmp.eq.s32.totalorder %s16, 1
    %p46 = por %p44, %p45
    %p47 = scmp.ne.s32.totalorder %s36, %s37
    %p48 = scmp.eq.s32.totalorder %s16, 0
    %p49 = por %p47, %p48
    %p50 = scmp.ne.s32.totalorder %s36, %s37
    %p51 = scmp.eq.s32.totalorder %s17, 1
    %p52 = por %p50, %p51
    %p54 = scmp.ne.s32.totalorder %s37, %s53
    %p55 = scmp.eq.s32.totalorder %s17, 0
    %p56 = por %p54, %p55
    %s58 = sadd.s32 %s57, 1
    %p61 = scmp.eq.s32.totalorder %s11, 1
    %p62 = scmp.ne.s32.totalorder %s57, %s59
    %p63 = scmp.eq.s32.totalorder %s11, 0
    %p64 = por %p62, %p63
    %p65 = scmp.ne.s32.totalorder %s57, %s59
    %p66 = scmp.eq.s32.totalorder %s16, 1
    %p67 = por %p65, %p66
    %p68 = scmp.ne.s32.totalorder %s59, %s60
    %p69 = scmp.eq.s32.totalorder %s16, 0
    %p70 = por %p68, %p69
    %p71 = scmp.ne.s32.totalorder %s59, %s60
    %p72 = scmp.eq.s32.totalorder %s17, 1
    %p73 = por %p71, %p72
    %p75 = scmp.ne.s32.totalorder %s60, %s74
    %p76 = scmp.eq.s32.totalorder %s17, 0
    %p77 = por %p75, %p76
    %s79 = sadd.s32 %s78, 1
    %p82 = scmp.eq.s32.totalorder %s11, 1
    %p83 = scmp.ne.s32.totalorder %s78, %s80
    %p84 = scmp.eq.s32.totalorder %s11, 0
    %p85 = por %p83, %p84
    %p86 = scmp.ne.s32.totalorder %s78, %s80
    %p87 = scmp.eq.s32.totalorder %s16, 1
    %p88 = por %p86, %p87
    %p89 = scmp.ne.s32.totalorder %s80, %s81
    %p90 = scmp.eq.s32.totalorder %s16, 0
    %p91 = por %p89, %p90
    %p92 = scmp.ne.s32.totalorder %s80, %s81
    %p93 = scmp.eq.s32.totalorder %s17, 1
    %p94 = por %p92, %p93
    %p96 = scmp.ne.s32.totalorder %s81, %s95
    %p97 = scmp.eq.s32.totalorder %s17, 0
    %p98 = por %p96, %p97
    %s99 = ssub.s32 %s18, %s30
    %s100 = ssub.s32 %s19, %s26
    %s101 = sor.u32 %s99, %s100
    %p102 = scmp.eq.s32.totalorder %s101, 0
    %s104 = sadd.s32 %s103, 1
    %s105 = scalar_select %p102, %s103, %s104
    %p108 = pneg %p102
    %p109 = scmp.eq.s32.totalorder %s11, 1
    %p110 = por %p108, %p109
    %p111 = scmp.ne.s32.totalorder %s103, %s106
    %p112 = scmp.eq.s32.totalorder %s11, 0
    %p113 = por %p111, %p112
    %p114 = scmp.ne.s32.totalorder %s103, %s106
    %p115 = scmp.eq.s32.totalorder %s16, 1
    %p116 = por %p114, %p115
    %p117 = scmp.ne.s32.totalorder %s106, %s107
    %p118 = scmp.eq.s32.totalorder %s16, 0
    %p119 = por %p117, %p118
    %p120 = scmp.ne.s32.totalorder %s106, %s107
    %p121 = scmp.eq.s32.totalorder %s17, 1
    %p122 = por %p120, %p121
    %p124 = scmp.ne.s32.totalorder %s107, %s123
    %p125 = scmp.eq.s32.totalorder %s17, 0
    %p126 = por %p124, %p125
    %s127 = ssub.s32 %s18, %s30
    %s128 = ssub.s32 %s19, %s26
    %s129 = sor.u32 %s127, %s128
    %p130 = scmp.eq.s32.totalorder %s129, 0
    %s132 = sadd.s32 %s131, 1
    %s133 = scalar_select %p130, %s131, %s132
    %p136 = pneg %p130
    %p137 = scmp.eq.s32.totalorder %s11, 1
    %p138 = por %p136, %p137
    %p139 = scmp.ne.s32.totalorder %s131, %s134
    %p140 = scmp.eq.s32.totalorder %s11, 0
    %p141 = por %p139, %p140
    %p142 = scmp.ne.s32.totalorder %s131, %s134
    %p143 = scmp.eq.s32.totalorder %s16, 1
    %p144 = por %p142, %p143
    %p145 = scmp.ne.s32.totalorder %s134, %s135
    %p146 = scmp.eq.s32.totalorder %s16, 0
    %p147 = por %p145, %p146
    %p148 = scmp.ne.s32.totalorder %s134, %s135
    %p149 = scmp.eq.s32.totalorder %s17, 1
    %p150 = por %p148, %p149
    %p152 = scmp.ne.s32.totalorder %s135, %s151
    %p153 = scmp.eq.s32.totalorder %s17, 0
    %p154 = por %p152, %p153
    %p155 = scmp.le.s32.totalorder 1, %s11
    %p156 = scmp.lt.s32.totalorder %s11, 3
    %p157 = pnand %p155, %p156
    %p158 = pneg %p157
    // Predicated region
    $region9: #{convolution_forward.2} parent=5 // pred_check
      _
    $region10: #{convolution_forward.2} parent=5 // pred_check_branch
      %160 = sbr.rel (%p157) target = $region12
    $region11: #{convolution_forward.2} parent=5 // pred_region
      %s161 = ssub.s32 %s11, 1
      // Predicated region
      $region13: #{convolution_forward.2} parent=11 // pred_check
        %p162 = pneg %p70
      $region14: #{convolution_forward.2} parent=11 // pred_check_branch
        %164 = sbr.rel (%p162) target = $region16
      $region15: #{convolution_forward.2} parent=11 // pred_region
        _
      $region16: #{convolution_forward.2} parent=11 // pred_fallthru
        _
      // Predicated region
      $region17: #{convolution_forward.2} parent=11 // pred_check
        %p165 = pneg %p91
      $region18: #{convolution_forward.2} parent=11 // pred_check_branch
        %167 = sbr.rel (%p165) target = $region20
      $region19: #{convolution_forward.2} parent=11 // pred_region
        _
      $region20: #{convolution_forward.2} parent=11 // pred_fallthru
        _
    $region12: #{convolution_forward.2} parent=5 // pred_fallthru
      _
    %p168 = scmp.lt.s32.totalorder %s11, 2
    // Predicated region
    $region21: #{convolution_forward.2} parent=5 // pred_check
      %p169 = pneg %p168
    $region22: #{convolution_forward.2} parent=5 // pred_check_branch
      %171 = sbr.rel (%p169) target = $region24
    $region23: #{convolution_forward.2} parent=5 // pred_region
      // Predicated region
      $region25: #{convolution_forward.2} parent=23 // pred_check
        %p172 = pneg %p43
      $region26: #{convolution_forward.2} parent=23 // pred_check_branch
        %174 = sbr.rel (%p172) target = $region28
      $region27: #{convolution_forward.2} parent=23 // pred_region
        %p175 = scmp.lt.s32.totalorder %s18, 1
        %s176 = scalar_select %p175, %s18, 1
        %s177 = smul.addr %s176, 54
        %s178 = smul.addr %s177, 8
        %s179 = scalar_lea.vmem %s0, %s178
      $region28: #{convolution_forward.2} parent=23 // pred_fallthru
        _
    $region24: #{convolution_forward.2} parent=5 // pred_fallthru
      _
    %p180 = scmp.le.s32.totalorder 1, %s11
    %p181 = scmp.lt.s32.totalorder %s11, 3
    %p182 = pnand %p180, %p181
    %p183 = pneg %p182
    // Predicated region
    $region29: #{convolution_forward.2} parent=5 // pred_check
      _
    $region30: #{convolution_forward.2} parent=5 // pred_check_branch
      %185 = sbr.rel (%p182) target = $region32
    $region31: #{convolution_forward.2} parent=5 // pred_region
      %s186 = ssub.s32 %s11, 1
      %p187 = scmp.lt.s32.totalorder %s20, 1
      %s188 = scalar_select %p187, %s20, 1
      %s189 = smul.addr %s188, 54
      %s190 = smul.addr %s189, 8
      %s191 = scalar_lea.vmem %s0, %s190
      %p192 = pneg %p49
      %p193 = pneg %p46
      %p194 = pneg %p70
      %p195 = pneg %p67
      %p196 = pneg %p91
      %p197 = pneg %p88
      %p198 = pneg %p119
      %p199 = pneg %p116
      %s200 = smul.u32 2, %s21
      %p201 = scmp.lt.s32.totalorder %s20, 1
      %s202 = scalar_select %p201, %s20, 1
      %p203 = scmp.lt.s32.totalorder %s200, 1
      %s204 = scalar_select %p203, %s200, 1
      %s205 = smul.addr %s202, 2
      %s206 = sadd.s32 %s204, %s205
      %s207 = smul.addr %s206, 8
      %s208 = scalar_lea.vmem %s3, %s207
      %p209 = pneg %p147
      %p210 = pneg %p144
      %p211 = scmp.lt.s32.totalorder %s20, 1
      %s212 = scalar_select %p211, %s20, 1
      %p213 = scmp.lt.s32.totalorder %s21, 0
      %s214 = scalar_select %p213, %s21, 0
      %s215 = sadd.s32 %s214, %s212
      %s216 = smul.addr %s215, 8
      %s217 = scalar_lea.vmem %s4, %s216
      %p218 = scmp.lt.s32.totalorder %s20, 1
      %s219 = scalar_select %p218, %s20, 1
      %s220 = smul.addr %s219, 54
      %s221 = smul.addr %s220, 8
      %s222 = scalar_lea.vmem %s0, %s221
      %s223 = smul.u32 2, %s21
      %p224 = scmp.lt.s32.totalorder %s20, 1
      %s225 = scalar_select %p224, %s20, 1
      %p226 = scmp.lt.s32.totalorder %s223, 1
      %s227 = scalar_select %p226, %s223, 1
      %s228 = smul.addr %s225, 2
      %s229 = sadd.s32 %s227, %s228
      %s230 = smul.addr %s229, 8
      %s231 = scalar_lea.vmem %s3, %s230
      %s232 = smul.u32 2, %s21
      %p233 = scmp.lt.s32.totalorder %s20, 1
      %s234 = scalar_select %p233, %s20, 1
      %p235 = scmp.lt.s32.totalorder %s21, 0
      %s236 = scalar_select %p235, %s21, 0
      %s237 = sadd.s32 %s236, %s234
      %s238 = smul.addr %s237, 8
      %s239 = scalar_lea.vmem %s4, %s238
      %s240 = smul.u32 %s21, 16
      %s241 = smul.u32 %s240, 24
      %s242 = scalar_lea.vmem %s222, %s241
      %v243 = vld [vmem:[%s242] sm:$0xff]
      %v244 = vld [vmem:[%s242 + $0x8] sm:$0xff]
      %v245 = vld [vmem:[%s242 + $0x18] sm:$0xff]
      %v246 = vld [vmem:[%s242 + $0x20] sm:$0xff]
      %v247 = vld [vmem:[%s242 + $0x30] sm:$0xff]
      %v248 = vld [vmem:[%s242 + $0x38] sm:$0xff]
      %v249 = vld [vmem:[%s242 + $0x48] sm:$0xff]
      %v250 = vld [vmem:[%s242 + $0x50] sm:$0xff]
      %v251 = vld [vmem:[%s242 + $0x60] sm:$0xff]
      %v252 = vld [vmem:[%s242 + $0x68] sm:$0xff]
      %v253 = vld [vmem:[%s242 + $0x78] sm:$0xff]
      %v254 = vld [vmem:[%s242 + $0x80] sm:$0xff]
      %v255 = vld [vmem:[%s242 + $0x90] sm:$0xff]
      %v256 = vld [vmem:[%s242 + $0x98] sm:$0xff]
      %v257 = vld [vmem:[%s242 + $0xa8] sm:$0xff]
      %v258 = vld [vmem:[%s242 + $0xb0] sm:$0xff]
      %v259 = vld [vmem:[%s242 + $0xc0] sm:$0xff]
      %v260 = vld [vmem:[%s242 + $0xc8] sm:$0xff]
      %v261 = vld [vmem:[%s242 + $0xd8] sm:$0xff]
      %v262 = vld [vmem:[%s242 + $0xe0] sm:$0xff]
      %v263 = vld [vmem:[%s242 + $0xf0] sm:$0xff]
      %v264 = vld [vmem:[%s242 + $0xf8] sm:$0xff]
      %v265 = vld [vmem:[%s242 + $0x108] sm:$0xff]
      %v266 = vld [vmem:[%s242 + $0x110] sm:$0xff]
      %v267 = vld [vmem:[%s242 + $0x120] sm:$0xff]
      %v268 = vld [vmem:[%s242 + $0x128] sm:$0xff]
      %v269 = vld [vmem:[%s242 + $0x138] sm:$0xff]
      %v270 = vld [vmem:[%s242 + $0x140] sm:$0xff]
      %v271 = vld [vmem:[%s242 + $0x150] sm:$0xff]
      %v272 = vld [vmem:[%s242 + $0x158] sm:$0xff]
      %v273 = vld [vmem:[%s242 + $0x168] sm:$0xff]
      %v274 = vld [vmem:[%s242 + $0x170] sm:$0xff]
      %v275 = vld [vmem:[%s1] sm:$0xff]
      %v276 = vld [vmem:[%s242 + $0x1] sm:$0xff]
      %v277 = vld [vmem:[%s242 + $0x9] sm:$0xff]
      %v278 = vld [vmem:[%s242 + $0x19] sm:$0xff]
      %v279 = vld [vmem:[%s242 + $0x21] sm:$0xff]
      %v280 = vld [vmem:[%s242 + $0x31] sm:$0xff]
      %v281 = vld [vmem:[%s242 + $0x39] sm:$0xff]
      %v282 = vld [vmem:[%s242 + $0x49] sm:$0xff]
      %v283 = vld [vmem:[%s242 + $0x51] sm:$0xff]
      %v284 = vld [vmem:[%s242 + $0x61] sm:$0xff]
      %v285 = vld [vmem:[%s242 + $0x69] sm:$0xff]
      %v286 = vld [vmem:[%s242 + $0x79] sm:$0xff]
      %v287 = vld [vmem:[%s242 + $0x81] sm:$0xff]
      %v288 = vld [vmem:[%s242 + $0x91] sm:$0xff]
      %v289 = vld [vmem:[%s242 + $0x99] sm:$0xff]
      %v290 = vld [vmem:[%s242 + $0xa9] sm:$0xff]
      %v291 = vld [vmem:[%s242 + $0xb1] sm:$0xff]
      %v292 = vld [vmem:[%s242 + $0xc1] sm:$0xff]
      %v293 = vld [vmem:[%s242 + $0xc9] sm:$0xff]
      %v294 = vld [vmem:[%s242 + $0xd9] sm:$0xff]
      %v295 = vld [vmem:[%s242 + $0xe1] sm:$0xff]
      %v296 = vld [vmem:[%s242 + $0xf1] sm:$0xff]
      %v297 = vld [vmem:[%s242 + $0xf9] sm:$0xff]
      %v298 = vld [vmem:[%s242 + $0x109] sm:$0xff]
      %v299 = vld [vmem:[%s242 + $0x111] sm:$0xff]
      %v300 = vld [vmem:[%s242 + $0x121] sm:$0xff]
      %v301 = vld [vmem:[%s242 + $0x129] sm:$0xff]
      %v302 = vld [vmem:[%s242 + $0x139] sm:$0xff]
      %v303 = vld [vmem:[%s242 + $0x141] sm:$0xff]
      %v304 = vld [vmem:[%s242 + $0x151] sm:$0xff]
      %v305 = vld [vmem:[%s242 + $0x159] sm:$0xff]
      %v306 = vld [vmem:[%s242 + $0x169] sm:$0xff]
      %v307 = vld [vmem:[%s242 + $0x171] sm:$0xff]
      %s308 = scalar_lea.vmem %s1, 8
      %v309 = vld [vmem:[%s308] sm:$0xff]
      %vm310 = vcmask 31744
      %v312 = vsel %vm310, %v309, 0
      %v315 = vsel %vm310, %v276, 0
      %v318 = vsel %vm310, %v277, 0
      %v321 = vsel %vm310, %v278, 0
      %v324 = vsel %vm310, %v279, 0
      %v327 = vsel %vm310, %v280, 0
      %v330 = vsel %vm310, %v281, 0
      %v333 = vsel %vm310, %v282, 0
      %v336 = vsel %vm310, %v283, 0
      %v339 = vsel %vm310, %v284, 0
      %v342 = vsel %vm310, %v285, 0
      %v345 = vsel %vm310, %v286, 0
      %v348 = vsel %vm310, %v287, 0
      %v351 = vsel %vm310, %v288, 0
      %v354 = vsel %vm310, %v289, 0
      %v357 = vsel %vm310, %v290, 0
      %v360 = vsel %vm310, %v291, 0
      %v363 = vsel %vm310, %v292, 0
      %v366 = vsel %vm310, %v293, 0
      %v369 = vsel %vm310, %v294, 0
      %v372 = vsel %vm310, %v295, 0
      %v375 = vsel %vm310, %v296, 0
      %v378 = vsel %vm310, %v297, 0
      %v381 = vsel %vm310, %v298, 0
      %v384 = vsel %vm310, %v299, 0
      %v387 = vsel %vm310, %v300, 0
      %v390 = vsel %vm310, %v301, 0
      %v393 = vsel %vm310, %v302, 0
      %v396 = vsel %vm310, %v303, 0
      %v399 = vsel %vm310, %v304, 0
      %v402 = vsel %vm310, %v305, 0
      %v405 = vsel %vm310, %v306, 0
      %v408 = vsel %vm310, %v307, 0
      %410 = vmatpush.xpose.msra.mxu0 %v360
      %411 = vmatpush.xpose.msra.mxu0 %v357
      %412 = vmatpush.xpose.msra.mxu0 %v354
      %413 = vmatpush.xpose.msra.mxu0 %v351
      %414 = vmatpush.xpose.msra.mxu0 %v348
      %415 = vmatpush.xpose.msra.mxu0 %v345
      %416 = vmatpush.xpose.msra.mxu0 %v342
      %417 = vmatpush.xpose.msra.mxu0 %v339
      %418 = vmatpush.xpose.msra.mxu0 %v336
      %419 = vmatpush.xpose.msra.mxu0 %v333
      %420 = vmatpush.xpose.msra.mxu0 %v330
      %421 = vmatpush.xpose.msra.mxu0 %v327
      %422 = vmatpush.xpose.msra.mxu0 %v324
      %423 = vmatpush.xpose.msra.mxu0 %v321
      %424 = vmatpush.xpose.msra.mxu0 %v318
      %425 = vmatpush.xpose.msra.mxu0 %v315
      %426 = vmatmul.f32.gmra.mxu0 %v312
      %v427 = vpop.f32.mrf.mxu0
      %v428 = vadd.f32 0.0, %v427
      %429 = vdwg.mxu0
      %430 = vmatpush.xpose.msra.mxu0 %v408
      %431 = vmatpush.xpose.msra.mxu0 %v405
      %432 = vmatpush.xpose.msra.mxu0 %v402
      %433 = vmatpush.xpose.msra.mxu0 %v399
      %434 = vmatpush.xpose.msra.mxu0 %v396
      %435 = vmatpush.xpose.msra.mxu0 %v393
      %436 = vmatpush.xpose.msra.mxu0 %v390
      %437 = vmatpush.xpose.msra.mxu0 %v387
      %438 = vmatpush.xpose.msra.mxu0 %v384
      %439 = vmatpush.xpose.msra.mxu0 %v381
      %440 = vmatpush.xpose.msra.mxu0 %v378
      %441 = vmatpush.xpose.msra.mxu0 %v375
      %442 = vmatpush.xpose.msra.mxu0 %v372
      %443 = vmatpush.xpose.msra.mxu0 %v369
      %444 = vmatpush.xpose.msra.mxu0 %v366
      %445 = vmatpush.xpose.msra.mxu0 %v363
      %446 = vmatmul.f32.gmra.mxu0 %v312
      %v447 = vpop.f32.mrf.mxu0
      %v448 = vadd.f32 0.0, %v447
      %449 = vdwg.mxu0
      %v451 = vsel %vm310, %v275, 0
      %v454 = vsel %vm310, %v243, 0
      %v457 = vsel %vm310, %v244, 0
      %v460 = vsel %vm310, %v245, 0
      %v463 = vsel %vm310, %v246, 0
      %v466 = vsel %vm310, %v247, 0
      %v469 = vsel %vm310, %v248, 0
      %v472 = vsel %vm310, %v249, 0
      %v475 = vsel %vm310, %v250, 0
      %v478 = vsel %vm310, %v251, 0
      %v481 = vsel %vm310, %v252, 0
      %v484 = vsel %vm310, %v253, 0
      %v487 = vsel %vm310, %v254, 0
      %v490 = vsel %vm310, %v255, 0
      %v493 = vsel %vm310, %v256, 0
      %v496 = vsel %vm310, %v257, 0
      %v499 = vsel %vm310, %v258, 0
      %v502 = vsel %vm310, %v259, 0
      %v505 = vsel %vm310, %v260, 0
      %v508 = vsel %vm310, %v261, 0
      %v511 = vsel %vm310, %v262, 0
      %v514 = vsel %vm310, %v263, 0
      %v517 = vsel %vm310, %v264, 0
      %v520 = vsel %vm310, %v265, 0
      %v523 = vsel %vm310, %v266, 0
      %v526 = vsel %vm310, %v267, 0
      %v529 = vsel %vm310, %v268, 0
      %v532 = vsel %vm310, %v269, 0
      %v535 = vsel %vm310, %v270, 0
      %v538 = vsel %vm310, %v271, 0
      %v541 = vsel %vm310, %v272, 0
      %v544 = vsel %vm310, %v273, 0
      %v547 = vsel %vm310, %v274, 0
      %549 = vmatpush.xpose.msra.mxu0 %v499
      %550 = vmatpush.xpose.msra.mxu0 %v496
      %551 = vmatpush.xpose.msra.mxu0 %v493
      %552 = vmatpush.xpose.msra.mxu0 %v490
      %553 = vmatpush.xpose.msra.mxu0 %v487
      %554 = vmatpush.xpose.msra.mxu0 %v484
      %555 = vmatpush.xpose.msra.mxu0 %v481
      %556 = vmatpush.xpose.msra.mxu0 %v478
      %557 = vmatpush.xpose.msra.mxu0 %v475
      %558 = vmatpush.xpose.msra.mxu0 %v472
      %559 = vmatpush.xpose.msra.mxu0 %v469
      %560 = vmatpush.xpose.msra.mxu0 %v466
      %561 = vmatpush.xpose.msra.mxu0 %v463
      %562 = vmatpush.xpose.msra.mxu0 %v460
      %563 = vmatpush.xpose.msra.mxu0 %v457
      %564 = vmatpush.xpose.msra.mxu0 %v454
      %565 = vmatmul.f32.gmra.mxu0 %v451
      %v566 = vpop.f32.mrf.mxu0
      %v567 = vadd.f32 %v428, %v566
      %568 = vdwg.mxu0
      %569 = vmatpush.xpose.msra.mxu0 %v547
      %570 = vmatpush.xpose.msra.mxu0 %v544
      %571 = vmatpush.xpose.msra.mxu0 %v541
      %572 = vmatpush.xpose.msra.mxu0 %v538
      %573 = vmatpush.xpose.msra.mxu0 %v535
      %574 = vmatpush.xpose.msra.mxu0 %v532
      %575 = vmatpush.xpose.msra.mxu0 %v529
      %576 = vmatpush.xpose.msra.mxu0 %v526
      %577 = vmatpush.xpose.msra.mxu0 %v523
      %578 = vmatpush.xpose.msra.mxu0 %v520
      %579 = vmatpush.xpose.msra.mxu0 %v517
      %580 = vmatpush.xpose.msra.mxu0 %v514
      %581 = vmatpush.xpose.msra.mxu0 %v511
      %582 = vmatpush.xpose.msra.mxu0 %v508
      %583 = vmatpush.xpose.msra.mxu0 %v505
      %584 = vmatpush.xpose.msra.mxu0 %v502
      %585 = vmatmul.f32.gmra.mxu0 %v451
      %v586 = vpop.f32.mrf.mxu0
      %v587 = vadd.f32 %v448, %v586
      %588 = vdwg.mxu0
      %v589 = vld [vmem:[%s242 + $0x2] sm:$0xff]
      %v590 = vld [vmem:[%s242 + $0xa] sm:$0xff]
      %v591 = vld [vmem:[%s242 + $0x1a] sm:$0xff]
      %v592 = vld [vmem:[%s242 + $0x22] sm:$0xff]
      %v593 = vld [vmem:[%s242 + $0x32] sm:$0xff]
      %v594 = vld [vmem:[%s242 + $0x3a] sm:$0xff]
      %v595 = vld [vmem:[%s242 + $0x4a] sm:$0xff]
      %v596 = vld [vmem:[%s242 + $0x52] sm:$0xff]
      %v597 = vld [vmem:[%s242 + $0x62] sm:$0xff]
      %v598 = vld [vmem:[%s242 + $0x6a] sm:$0xff]
      %v599 = vld [vmem:[%s242 + $0x7a] sm:$0xff]
      %v600 = vld [vmem:[%s242 + $0x82] sm:$0xff]
      %v601 = vld [vmem:[%s242 + $0x92] sm:$0xff]
      %v602 = vld [vmem:[%s242 + $0x9a] sm:$0xff]
      %v603 = vld [vmem:[%s242 + $0xaa] sm:$0xff]
      %v604 = vld [vmem:[%s242 + $0xb2] sm:$0xff]
      %v605 = vld [vmem:[%s242 + $0xc2] sm:$0xff]
      %v606 = vld [vmem:[%s242 + $0xca] sm:$0xff]
      %v607 = vld [vmem:[%s242 + $0xda] sm:$0xff]
      %v608 = vld [vmem:[%s242 + $0xe2] sm:$0xff]
      %v609 = vld [vmem:[%s242 + $0xf2] sm:$0xff]
      %v610 = vld [vmem:[%s242 + $0xfa] sm:$0xff]
      %v611 = vld [vmem:[%s242 + $0x10a] sm:$0xff]
      %v612 = vld [vmem:[%s242 + $0x112] sm:$0xff]
      %v613 = vld [vmem:[%s242 + $0x122] sm:$0xff]
      %v614 = vld [vmem:[%s242 + $0x12a] sm:$0xff]
      %v615 = vld [vmem:[%s242 + $0x13a] sm:$0xff]
      %v616 = vld [vmem:[%s242 + $0x142] sm:$0xff]
      %v617 = vld [vmem:[%s242 + $0x152] sm:$0xff]
      %v618 = vld [vmem:[%s242 + $0x15a] sm:$0xff]
      %v619 = vld [vmem:[%s242 + $0x16a] sm:$0xff]
      %v620 = vld [vmem:[%s242 + $0x172] sm:$0xff]
      %s621 = scalar_lea.vmem %s1, 16
      %v622 = vld [vmem:[%s621] sm:$0xff]
      %v624 = vsel %vm310, %v622, 0
      %v627 = vsel %vm310, %v589, 0
      %v630 = vsel %vm310, %v590, 0
      %v633 = vsel %vm310, %v591, 0
      %v636 = vsel %vm310, %v592, 0
      %v639 = vsel %vm310, %v593, 0
      %v642 = vsel %vm310, %v594, 0
      %v645 = vsel %vm310, %v595, 0
      %v648 = vsel %vm310, %v596, 0
      %v651 = vsel %vm310, %v597, 0
      %v654 = vsel %vm310, %v598, 0
      %v657 = vsel %vm310, %v599, 0
      %v660 = vsel %vm310, %v600, 0
      %v663 = vsel %vm310, %v601, 0
      %v666 = vsel %vm310, %v602, 0
      %v669 = vsel %vm310, %v603, 0
      %v672 = vsel %vm310, %v604, 0
      %v675 = vsel %vm310, %v605, 0
      %v678 = vsel %vm310, %v606, 0
      %v681 = vsel %vm310, %v607, 0
      %v684 = vsel %vm310, %v608, 0
      %v687 = vsel %vm310, %v609, 0
      %v690 = vsel %vm310, %v610, 0
      %v693 = vsel %vm310, %v611, 0
      %v696 = vsel %vm310, %v612, 0
      %v699 = vsel %vm310, %v613, 0
      %v702 = vsel %vm310, %v614, 0
      %v705 = vsel %vm310, %v615, 0
      %v708 = vsel %vm310, %v616, 0
      %v711 = vsel %vm310, %v617, 0
      %v714 = vsel %vm310, %v618, 0
      %v717 = vsel %vm310, %v619, 0
      %v720 = vsel %vm310, %v620, 0
      %722 = vmatpush.xpose.msra.mxu0 %v672
      %723 = vmatpush.xpose.msra.mxu0 %v669
      %724 = vmatpush.xpose.msra.mxu0 %v666
      %725 = vmatpush.xpose.msra.mxu0 %v663
      %726 = vmatpush.xpose.msra.mxu0 %v660
      %727 = vmatpush.xpose.msra.mxu0 %v657
      %728 = vmatpush.xpose.msra.mxu0 %v654
      %729 = vmatpush.xpose.msra.mxu0 %v651
      %730 = vmatpush.xpose.msra.mxu0 %v648
      %731 = vmatpush.xpose.msra.mxu0 %v645
      %732 = vmatpush.xpose.msra.mxu0 %v642
      %733 = vmatpush.xpose.msra.mxu0 %v639
      %734 = vmatpush.xpose.msra.mxu0 %v636
      %735 = vmatpush.xpose.msra.mxu0 %v633
      %736 = vmatpush.xpose.msra.mxu0 %v630
      %737 = vmatpush.xpose.msra.mxu0 %v627
      %738 = vmatmul.f32.gmra.mxu0 %v624
      %v739 = vpop.f32.mrf.mxu0
      %v740 = vadd.f32 0.0, %v739
      %741 = vdwg.mxu0
      %742 = vmatpush.xpose.msra.mxu0 %v720
      %743 = vmatpush.xpose.msra.mxu0 %v717
      %744 = vmatpush.xpose.msra.mxu0 %v714
      %745 = vmatpush.xpose.msra.mxu0 %v711
      %746 = vmatpush.xpose.msra.mxu0 %v708
      %747 = vmatpush.xpose.msra.mxu0 %v705
      %748 = vmatpush.xpose.msra.mxu0 %v702
      %749 = vmatpush.xpose.msra.mxu0 %v699
      %750 = vmatpush.xpose.msra.mxu0 %v696
      %751 = vmatpush.xpose.msra.mxu0 %v693
      %752 = vmatpush.xpose.msra.mxu0 %v690
      %753 = vmatpush.xpose.msra.mxu0 %v687
      %754 = vmatpush.xpose.msra.mxu0 %v684
      %755 = vmatpush.xpose.msra.mxu0 %v681
      %756 = vmatpush.xpose.msra.mxu0 %v678
      %757 = vmatpush.xpose.msra.mxu0 %v675
      %758 = vmatmul.f32.gmra.mxu0 %v624
      %v759 = vpop.f32.mrf.mxu0
      %v760 = vadd.f32 0.0, %v759
      %761 = vdwg.mxu0
      %v762 = vadd.f32 %v567, %v740
      %v763 = vadd.f32 %v587, %v760
      %s764 = sadd.s32 %s240, 1
      %s765 = smul.u32 %s764, 24
      %s766 = scalar_lea.vmem %s222, %s765
      %v767 = vld [vmem:[%s766] sm:$0xff]
      %v768 = vld [vmem:[%s766 + $0x8] sm:$0xff]
      %v769 = vld [vmem:[%s766 + $0x18] sm:$0xff]
      %v770 = vld [vmem:[%s766 + $0x20] sm:$0xff]
      %v771 = vld [vmem:[%s766 + $0x30] sm:$0xff]
      %v772 = vld [vmem:[%s766 + $0x38] sm:$0xff]
      %v773 = vld [vmem:[%s766 + $0x48] sm:$0xff]
      %v774 = vld [vmem:[%s766 + $0x50] sm:$0xff]
      %v775 = vld [vmem:[%s766 + $0x60] sm:$0xff]
      %v776 = vld [vmem:[%s766 + $0x68] sm:$0xff]
      %v777 = vld [vmem:[%s766 + $0x78] sm:$0xff]
      %v778 = vld [vmem:[%s766 + $0x80] sm:$0xff]
      %v779 = vld [vmem:[%s766 + $0x90] sm:$0xff]
      %v780 = vld [vmem:[%s766 + $0x98] sm:$0xff]
      %v781 = vld [vmem:[%s766 + $0xa8] sm:$0xff]
      %v782 = vld [vmem:[%s766 + $0xb0] sm:$0xff]
      %v783 = vld [vmem:[%s766 + $0xc0] sm:$0xff]
      %v784 = vld [vmem:[%s766 + $0xc8] sm:$0xff]
      %v785 = vld [vmem:[%s766 + $0xd8] sm:$0xff]
      %v786 = vld [vmem:[%s766 + $0xe0] sm:$0xff]
      %v787 = vld [vmem:[%s766 + $0xf0] sm:$0xff]
      %v788 = vld [vmem:[%s766 + $0xf8] sm:$0xff]
      %v789 = vld [vmem:[%s766 + $0x108] sm:$0xff]
      %v790 = vld [vmem:[%s766 + $0x110] sm:$0xff]
      %v791 = vld [vmem:[%s766 + $0x120] sm:$0xff]
      %v792 = vld [vmem:[%s766 + $0x128] sm:$0xff]
      %v793 = vld [vmem:[%s766 + $0x138] sm:$0xff]
      %v794 = vld [vmem:[%s766 + $0x140] sm:$0xff]
      %v795 = vld [vmem:[%s766 + $0x150] sm:$0xff]
      %v796 = vld [vmem:[%s766 + $0x158] sm:$0xff]
      %v797 = vld [vmem:[%s766 + $0x168] sm:$0xff]
      %v798 = vld [vmem:[%s766 + $0x170] sm:$0xff]
      %s799 = scalar_lea.vmem %s1, 24
      %v800 = vld [vmem:[%s799] sm:$0xff]
      %v802 = vsel %vm310, %v800, 0
      %v805 = vsel %vm310, %v767, 0
      %v808 = vsel %vm310, %v768, 0
      %v811 = vsel %vm310, %v769, 0
      %v814 = vsel %vm310, %v770, 0
      %v817 = vsel %vm310, %v771, 0
      %v820 = vsel %vm310, %v772, 0
      %v823 = vsel %vm310, %v773, 0
      %v826 = vsel %vm310, %v774, 0
      %v829 = vsel %vm310, %v775, 0
      %v832 = vsel %vm310, %v776, 0
      %v835 = vsel %vm310, %v777, 0
      %v838 = vsel %vm310, %v778, 0
      %v841 = vsel %vm310, %v779, 0
      %v844 = vsel %vm310, %v780, 0
      %v847 = vsel %vm310, %v781, 0
      %v850 = vsel %vm310, %v782, 0
      %v853 = vsel %vm310, %v783, 0
      %v856 = vsel %vm310, %v784, 0
      %v859 = vsel %vm310, %v785, 0
      %v862 = vsel %vm310, %v786, 0
      %v865 = vsel %vm310, %v787, 0
      %v868 = vsel %vm310, %v788, 0
      %v871 = vsel %vm310, %v789, 0
      %v874 = vsel %vm310, %v790, 0
      %v877 = vsel %vm310, %v791, 0
      %v880 = vsel %vm310, %v792, 0
      %v883 = vsel %vm310, %v793, 0
      %v886 = vsel %vm310, %v794, 0
      %v889 = vsel %vm310, %v795, 0
      %v892 = vsel %vm310, %v796, 0
      %v895 = vsel %vm310, %v797, 0
      %v898 = vsel %vm310, %v798, 0
      %900 = vmatpush.xpose.msra.mxu0 %v850
      %901 = vmatpush.xpose.msra.mxu0 %v847
      %902 = vmatpush.xpose.msra.mxu0 %v844
      %903 = vmatpush.xpose.msra.mxu0 %v841
      %904 = vmatpush.xpose.msra.mxu0 %v838
      %905 = vmatpush.xpose.msra.mxu0 %v835
      %906 = vmatpush.xpose.msra.mxu0 %v832
      %907 = vmatpush.xpose.msra.mxu0 %v829
      %908 = vmatpush.xpose.msra.mxu0 %v826
      %909 = vmatpush.xpose.msra.mxu0 %v823
      %910 = vmatpush.xpose.msra.mxu0 %v820
      %911 = vmatpush.xpose.msra.mxu0 %v817
      %912 = vmatpush.xpose.msra.mxu0 %v814
      %913 = vmatpush.xpose.msra.mxu0 %v811
      %914 = vmatpush.xpose.msra.mxu0 %v808
      %915 = vmatpush.xpose.msra.mxu0 %v805
      %916 = vmatmul.f32.gmra.mxu0 %v802
      %v917 = vpop.f32.mrf.mxu0
      %v918 = vadd.f32 0.0, %v917
      %919 = vdwg.mxu0
      %920 = vmatpush.xpose.msra.mxu0 %v898
      %921 = vmatpush.xpose.msra.mxu0 %v895
      %922 = vmatpush.xpose.msra.mxu0 %v892
      %923 = vmatpush.xpose.msra.mxu0 %v889
      %924 = vmatpush.xpose.msra.mxu0 %v886
      %925 = vmatpush.xpose.msra.mxu0 %v883
      %926 = vmatpush.xpose.msra.mxu0 %v880
      %927 = vmatpush.xpose.msra.mxu0 %v877
      %928 = vmatpush.xpose.msra.mxu0 %v874
      %929 = vmatpush.xpose.msra.mxu0 %v871
      %930 = vmatpush.xpose.msra.mxu0 %v868
      %931 = vmatpush.xpose.msra.mxu0 %v865
      %932 = vmatpush.xpose.msra.mxu0 %v862
      %933 = vmatpush.xpose.msra.mxu0 %v859
      %934 = vmatpush.xpose.msra.mxu0 %v856
      %935 = vmatpush.xpose.msra.mxu0 %v853
      %936 = vmatmul.f32.gmra.mxu0 %v802
      %v937 = vpop.f32.mrf.mxu0
      %v938 = vadd.f32 0.0, %v937
      %939 = vdwg.mxu0
      %v940 = vadd.f32 %v762, %v918
      %v941 = vadd.f32 %v763, %v938
      %v942 = vld [vmem:[%s766 + $0x1] sm:$0xff]
      %v943 = vld [vmem:[%s766 + $0x9] sm:$0xff]
      %v944 = vld [vmem:[%s766 + $0x19] sm:$0xff]
      %v945 = vld [vmem:[%s766 + $0x21] sm:$0xff]
      %v946 = vld [vmem:[%s766 + $0x31] sm:$0xff]
      %v947 = vld [vmem:[%s766 + $0x39] sm:$0xff]
      %v948 = vld [vmem:[%s766 + $0x49] sm:$0xff]
      %v949 = vld [vmem:[%s766 + $0x51] sm:$0xff]
      %v950 = vld [vmem:[%s766 + $0x61] sm:$0xff]
      %v951 = vld [vmem:[%s766 + $0x69] sm:$0xff]
      %v952 = vld [vmem:[%s766 + $0x79] sm:$0xff]
      %v953 = vld [vmem:[%s766 + $0x81] sm:$0xff]
      %v954 = vld [vmem:[%s766 + $0x91] sm:$0xff]
      %v955 = vld [vmem:[%s766 + $0x99] sm:$0xff]
      %v956 = vld [vmem:[%s766 + $0xa9] sm:$0xff]
      %v957 = vld [vmem:[%s766 + $0xb1] sm:$0xff]
      %v958 = vld [vmem:[%s766 + $0xc1] sm:$0xff]
      %v959 = vld [vmem:[%s766 + $0xc9] sm:$0xff]
      %v960 = vld [vmem:[%s766 + $0xd9] sm:$0xff]
      %v961 = vld [vmem:[%s766 + $0xe1] sm:$0xff]
      %v962 = vld [vmem:[%s766 + $0xf1] sm:$0xff]
      %v963 = vld [vmem:[%s766 + $0xf9] sm:$0xff]
      %v964 = vld [vmem:[%s766 + $0x109] sm:$0xff]
      %v965 = vld [vmem:[%s766 + $0x111] sm:$0xff]
      %v966 = vld [vmem:[%s766 + $0x121] sm:$0xff]
      %v967 = vld [vmem:[%s766 + $0x129] sm:$0xff]
      %v968 = vld [vmem:[%s766 + $0x139] sm:$0xff]
      %v969 = vld [vmem:[%s766 + $0x141] sm:$0xff]
      %v970 = vld [vmem:[%s766 + $0x151] sm:$0xff]
      %v971 = vld [vmem:[%s766 + $0x159] sm:$0xff]
      %v972 = vld [vmem:[%s766 + $0x169] sm:$0xff]
      %v973 = vld [vmem:[%s766 + $0x171] sm:$0xff]
      %s974 = scalar_lea.vmem %s1, 32
      %v975 = vld [vmem:[%s974] sm:$0xff]
      %v977 = vsel %vm310, %v975, 0
      %v980 = vsel %vm310, %v942, 0
      %v983 = vsel %vm310, %v943, 0
      %v986 = vsel %vm310, %v944, 0
      %v989 = vsel %vm310, %v945, 0
      %v992 = vsel %vm310, %v946, 0
      %v995 = vsel %vm310, %v947, 0
      %v998 = vsel %vm310, %v948, 0
      %v1001 = vsel %vm310, %v949, 0
      %v1004 = vsel %vm310, %v950, 0
      %v1007 = vsel %vm310, %v951, 0
      %v1010 = vsel %vm310, %v952, 0
      %v1013 = vsel %vm310, %v953, 0
      %v1016 = vsel %vm310, %v954, 0
      %v1019 = vsel %vm310, %v955, 0
      %v1022 = vsel %vm310, %v956, 0
      %v1025 = vsel %vm310, %v957, 0
      %v1028 = vsel %vm310, %v958, 0
      %v1031 = vsel %vm310, %v959, 0
      %v1034 = vsel %vm310, %v960, 0
      %v1037 = vsel %vm310, %v961, 0
      %v1040 = vsel %vm310, %v962, 0
      %v1043 = vsel %vm310, %v963, 0
      %v1046 = vsel %vm310, %v964, 0
      %v1049 = vsel %vm310, %v965, 0
      %v1052 = vsel %vm310, %v966, 0
      %v1055 = vsel %vm310, %v967, 0
      %v1058 = vsel %vm310, %v968, 0
      %v1061 = vsel %vm310, %v969, 0
      %v1064 = vsel %vm310, %v970, 0
      %v1067 = vsel %vm310, %v971, 0
      %v1070 = vsel %vm310, %v972, 0
      %v1073 = vsel %vm310, %v973, 0
      %1075 = vmatpush.xpose.msra.mxu0 %v1025
      %1076 = vmatpush.xpose.msra.mxu0 %v1022
      %1077 = vmatpush.xpose.msra.mxu0 %v1019
      %1078 = vmatpush.xpose.msra.mxu0 %v1016
      %1079 = vmatpush.xpose.msra.mxu0 %v1013
      %1080 = vmatpush.xpose.msra.mxu0 %v1010
      %1081 = vmatpush.xpose.msra.mxu0 %v1007
      %1082 = vmatpush.xpose.msra.mxu0 %v1004
      %1083 = vmatpush.xpose.msra.mxu0 %v1001
      %1084 = vmatpush.xpose.msra.mxu0 %v998
      %1085 = vmatpush.xpose.msra.mxu0 %v995
      %1086 = vmatpush.xpose.msra.mxu0 %v992
      %1087 = vmatpush.xpose.msra.mxu0 %v989
      %1088 = vmatpush.xpose.msra.mxu0 %v986
      %1089 = vmatpush.xpose.msra.mxu0 %v983
      %1090 = vmatpush.xpose.msra.mxu0 %v980
      %1091 = vmatmul.f32.gmra.mxu0 %v977
      %v1092 = vpop.f32.mrf.mxu0
      %v1093 = vadd.f32 0.0, %v1092
      %1094 = vdwg.mxu0
      %1095 = vmatpush.xpose.msra.mxu0 %v1073
      %1096 = vmatpush.xpose.msra.mxu0 %v1070
      %1097 = vmatpush.xpose.msra.mxu0 %v1067
      %1098 = vmatpush.xpose.msra.mxu0 %v1064
      %1099 = vmatpush.xpose.msra.mxu0 %v1061
      %1100 = vmatpush.xpose.msra.mxu0 %v1058
      %1101 = vmatpush.xpose.msra.mxu0 %v1055
      %1102 = vmatpush.xpose.msra.mxu0 %v1052
      %1103 = vmatpush.xpose.msra.mxu0 %v1049
      %1104 = vmatpush.xpose.msra.mxu0 %v1046
      %1105 = vmatpush.xpose.msra.mxu0 %v1043
      %1106 = vmatpush.xpose.msra.mxu0 %v1040
      %1107 = vmatpush.xpose.msra.mxu0 %v1037
      %1108 = vmatpush.xpose.msra.mxu0 %v1034
      %1109 = vmatpush.xpose.msra.mxu0 %v1031
      %1110 = vmatpush.xpose.msra.mxu0 %v1028
      %1111 = vmatmul.f32.gmra.mxu0 %v977
      %v1112 = vpop.f32.mrf.mxu0
      %v1113 = vadd.f32 0.0, %v1112
      %1114 = vdwg.mxu0
      %v1115 = vadd.f32 %v940, %v1093
      %v1116 = vadd.f32 %v941, %v1113
      %v1117 = vld [vmem:[%s766 + $0x2] sm:$0xff]
      %v1118 = vld [vmem:[%s766 + $0xa] sm:$0xff]
      %v1119 = vld [vmem:[%s766 + $0x1a] sm:$0xff]
      %v1120 = vld [vmem:[%s766 + $0x22] sm:$0xff]
      %v1121 = vld [vmem:[%s766 + $0x32] sm:$0xff]
      %v1122 = vld [vmem:[%s766 + $0x3a] sm:$0xff]
      %v1123 = vld [vmem:[%s766 + $0x4a] sm:$0xff]
      %v1124 = vld [vmem:[%s766 + $0x52] sm:$0xff]
      %v1125 = vld [vmem:[%s766 + $0x62] sm:$0xff]
      %v1126 = vld [vmem:[%s766 + $0x6a] sm:$0xff]
      %v1127 = vld [vmem:[%s766 + $0x7a] sm:$0xff]
      %v1128 = vld [vmem:[%s766 + $0x82] sm:$0xff]
      %v1129 = vld [vmem:[%s766 + $0x92] sm:$0xff]
      %v1130 = vld [vmem:[%s766 + $0x9a] sm:$0xff]
      %v1131 = vld [vmem:[%s766 + $0xaa] sm:$0xff]
      %v1132 = vld [vmem:[%s766 + $0xb2] sm:$0xff]
      %v1133 = vld [vmem:[%s766 + $0xc2] sm:$0xff]
      %v1134 = vld [vmem:[%s766 + $0xca] sm:$0xff]
      %v1135 = vld [vmem:[%s766 + $0xda] sm:$0xff]
      %v1136 = vld [vmem:[%s766 + $0xe2] sm:$0xff]
      %v1137 = vld [vmem:[%s766 + $0xf2] sm:$0xff]
      %v1138 = vld [vmem:[%s766 + $0xfa] sm:$0xff]
      %v1139 = vld [vmem:[%s766 + $0x10a] sm:$0xff]
      %v1140 = vld [vmem:[%s766 + $0x112] sm:$0xff]
      %v1141 = vld [vmem:[%s766 + $0x122] sm:$0xff]
      %v1142 = vld [vmem:[%s766 + $0x12a] sm:$0xff]
      %v1143 = vld [vmem:[%s766 + $0x13a] sm:$0xff]
      %v1144 = vld [vmem:[%s766 + $0x142] sm:$0xff]
      %v1145 = vld [vmem:[%s766 + $0x152] sm:$0xff]
      %v1146 = vld [vmem:[%s766 + $0x15a] sm:$0xff]
      %v1147 = vld [vmem:[%s766 + $0x16a] sm:$0xff]
      %v1148 = vld [vmem:[%s766 + $0x172] sm:$0xff]
      %s1149 = scalar_lea.vmem %s1, 40
      %v1150 = vld [vmem:[%s1149] sm:$0xff]
      %v1152 = vsel %vm310, %v1150, 0
      %v1155 = vsel %vm310, %v1117, 0
      %v1158 = vsel %vm310, %v1118, 0
      %v1161 = vsel %vm310, %v1119, 0
      %v1164 = vsel %vm310, %v1120, 0
      %v1167 = vsel %vm310, %v1121, 0
      %v1170 = vsel %vm310, %v1122, 0
      %v1173 = vsel %vm310, %v1123, 0
      %v1176 = vsel %vm310, %v1124, 0
      %v1179 = vsel %vm310, %v1125, 0
      %v1182 = vsel %vm310, %v1126, 0
      %v1185 = vsel %vm310, %v1127, 0
      %v1188 = vsel %vm310, %v1128, 0
      %v1191 = vsel %vm310, %v1129, 0
      %v1194 = vsel %vm310, %v1130, 0
      %v1197 = vsel %vm310, %v1131, 0
      %v1200 = vsel %vm310, %v1132, 0
      %v1203 = vsel %vm310, %v1133, 0
      %v1206 = vsel %vm310, %v1134, 0
      %v1209 = vsel %vm310, %v1135, 0
      %v1212 = vsel %vm310, %v1136, 0
      %v1215 = vsel %vm310, %v1137, 0
      %v1218 = vsel %vm310, %v1138, 0
      %v1221 = vsel %vm310, %v1139, 0
      %v1224 = vsel %vm310, %v1140, 0
      %v1227 = vsel %vm310, %v1141, 0
      %v1230 = vsel %vm310, %v1142, 0
      %v1233 = vsel %vm310, %v1143, 0
      %v1236 = vsel %vm310, %v1144, 0
      %v1239 = vsel %vm310, %v1145, 0
      %v1242 = vsel %vm310, %v1146, 0
      %v1245 = vsel %vm310, %v1147, 0
      %v1248 = vsel %vm310, %v1148, 0
      %1250 = vmatpush.xpose.msra.mxu0 %v1200
      %1251 = vmatpush.xpose.msra.mxu0 %v1197
      %1252 = vmatpush.xpose.msra.mxu0 %v1194
      %1253 = vmatpush.xpose.msra.mxu0 %v1191
      %1254 = vmatpush.xpose.msra.mxu0 %v1188
      %1255 = vmatpush.xpose.msra.mxu0 %v1185
      %1256 = vmatpush.xpose.msra.mxu0 %v1182
      %1257 = vmatpush.xpose.msra.mxu0 %v1179
      %1258 = vmatpush.xpose.msra.mxu0 %v1176
      %1259 = vmatpush.xpose.msra.mxu0 %v1173
      %1260 = vmatpush.xpose.msra.mxu0 %v1170
      %1261 = vmatpush.xpose.msra.mxu0 %v1167
      %1262 = vmatpush.xpose.msra.mxu0 %v1164
      %1263 = vmatpush.xpose.msra.mxu0 %v1161
      %1264 = vmatpush.xpose.msra.mxu0 %v1158
      %1265 = vmatpush.xpose.msra.mxu0 %v1155
      %1266 = vmatmul.f32.gmra.mxu0 %v1152
      %v1267 = vpop.f32.mrf.mxu0
      %v1268 = vadd.f32 0.0, %v1267
      %1269 = vdwg.mxu0
      %1270 = vmatpush.xpose.msra.mxu0 %v1248
      %1271 = vmatpush.xpose.msra.mxu0 %v1245
      %1272 = vmatpush.xpose.msra.mxu0 %v1242
      %1273 = vmatpush.xpose.msra.mxu0 %v1239
      %1274 = vmatpush.xpose.msra.mxu0 %v1236
      %1275 = vmatpush.xpose.msra.mxu0 %v1233
      %1276 = vmatpush.xpose.msra.mxu0 %v1230
      %1277 = vmatpush.xpose.msra.mxu0 %v1227
      %1278 = vmatpush.xpose.msra.mxu0 %v1224
      %1279 = vmatpush.xpose.msra.mxu0 %v1221
      %1280 = vmatpush.xpose.msra.mxu0 %v1218
      %1281 = vmatpush.xpose.msra.mxu0 %v1215
      %1282 = vmatpush.xpose.msra.mxu0 %v1212
      %1283 = vmatpush.xpose.msra.mxu0 %v1209
      %1284 = vmatpush.xpose.msra.mxu0 %v1206
      %1285 = vmatpush.xpose.msra.mxu0 %v1203
      %1286 = vmatmul.f32.gmra.mxu0 %v1152
      %v1287 = vpop.f32.mrf.mxu0
      %v1288 = vadd.f32 0.0, %v1287
      %1289 = vdwg.mxu0
      %v1290 = vadd.f32 %v1115, %v1268
      %v1291 = vadd.f32 %v1116, %v1288
      %s1292 = sadd.s32 %s240, 2
      %s1293 = smul.u32 %s1292, 24
      %s1294 = scalar_lea.vmem %s222, %s1293
      %v1295 = vld [vmem:[%s1294] sm:$0xff]
      %v1296 = vld [vmem:[%s1294 + $0x8] sm:$0xff]
      %v1297 = vld [vmem:[%s1294 + $0x18] sm:$0xff]
      %v1298 = vld [vmem:[%s1294 + $0x20] sm:$0xff]
      %v1299 = vld [vmem:[%s1294 + $0x30] sm:$0xff]
      %v1300 = vld [vmem:[%s1294 + $0x38] sm:$0xff]
      %v1301 = vld [vmem:[%s1294 + $0x48] sm:$0xff]
      %v1302 = vld [vmem:[%s1294 + $0x50] sm:$0xff]
      %v1303 = vld [vmem:[%s1294 + $0x60] sm:$0xff]
      %v1304 = vld [vmem:[%s1294 + $0x68] sm:$0xff]
      %v1305 = vld [vmem:[%s1294 + $0x78] sm:$0xff]
      %v1306 = vld [vmem:[%s1294 + $0x80] sm:$0xff]
      %v1307 = vld [vmem:[%s1294 + $0x90] sm:$0xff]
      %v1308 = vld [vmem:[%s1294 + $0x98] sm:$0xff]
      %v1309 = vld [vmem:[%s1294 + $0xa8] sm:$0xff]
      %v1310 = vld [vmem:[%s1294 + $0xb0] sm:$0xff]
      %v1311 = vld [vmem:[%s1294 + $0xc0] sm:$0xff]
      %v1312 = vld [vmem:[%s1294 + $0xc8] sm:$0xff]
      %v1313 = vld [vmem:[%s1294 + $0xd8] sm:$0xff]
      %v1314 = vld [vmem:[%s1294 + $0xe0] sm:$0xff]
      %v1315 = vld [vmem:[%s1294 + $0xf0] sm:$0xff]
      %v1316 = vld [vmem:[%s1294 + $0xf8] sm:$0xff]
      %v1317 = vld [vmem:[%s1294 + $0x108] sm:$0xff]
      %v1318 = vld [vmem:[%s1294 + $0x110] sm:$0xff]
      %v1319 = vld [vmem:[%s1294 + $0x120] sm:$0xff]
      %v1320 = vld [vmem:[%s1294 + $0x128] sm:$0xff]
      %v1321 = vld [vmem:[%s1294 + $0x138] sm:$0xff]
      %v1322 = vld [vmem:[%s1294 + $0x140] sm:$0xff]
      %v1323 = vld [vmem:[%s1294 + $0x150] sm:$0xff]
      %v1324 = vld [vmem:[%s1294 + $0x158] sm:$0xff]
      %v1325 = vld [vmem:[%s1294 + $0x168] sm:$0xff]
      %v1326 = vld [vmem:[%s1294 + $0x170] sm:$0xff]
      %s1327 = scalar_lea.vmem %s1, 48
      %v1328 = vld [vmem:[%s1327] sm:$0xff]
      %v1330 = vsel %vm310, %v1328, 0
      %v1333 = vsel %vm310, %v1295, 0
      %v1336 = vsel %vm310, %v1296, 0
      %v1339 = vsel %vm310, %v1297, 0
      %v1342 = vsel %vm310, %v1298, 0
      %v1345 = vsel %vm310, %v1299, 0
      %v1348 = vsel %vm310, %v1300, 0
      %v1351 = vsel %vm310, %v1301, 0
      %v1354 = vsel %vm310, %v1302, 0
      %v1357 = vsel %vm310, %v1303, 0
      %v1360 = vsel %vm310, %v1304, 0
      %v1363 = vsel %vm310, %v1305, 0
      %v1366 = vsel %vm310, %v1306, 0
      %v1369 = vsel %vm310, %v1307, 0
      %v1372 = vsel %vm310, %v1308, 0
      %v1375 = vsel %vm310, %v1309, 0
      %v1378 = vsel %vm310, %v1310, 0
      %v1381 = vsel %vm310, %v1311, 0
      %v1384 = vsel %vm310, %v1312, 0
      %v1387 = vsel %vm310, %v1313, 0
      %v1390 = vsel %vm310, %v1314, 0
      %v1393 = vsel %vm310, %v1315, 0
      %v1396 = vsel %vm310, %v1316, 0
      %v1399 = vsel %vm310, %v1317, 0
      %v1402 = vsel %vm310, %v1318, 0
      %v1405 = vsel %vm310, %v1319, 0
      %v1408 = vsel %vm310, %v1320, 0
      %v1411 = vsel %vm310, %v1321, 0
      %v1414 = vsel %vm310, %v1322, 0
      %v1417 = vsel %vm310, %v1323, 0
      %v1420 = vsel %vm310, %v1324, 0
      %v1423 = vsel %vm310, %v1325, 0
      %v1426 = vsel %vm310, %v1326, 0
      %1428 = vmatpush.xpose.msra.mxu0 %v1378
      %1429 = vmatpush.xpose.msra.mxu0 %v1375
      %1430 = vmatpush.xpose.msra.mxu0 %v1372
      %1431 = vmatpush.xpose.msra.mxu0 %v1369
      %1432 = vmatpush.xpose.msra.mxu0 %v1366
      %1433 = vmatpush.xpose.msra.mxu0 %v1363
      %1434 = vmatpush.xpose.msra.mxu0 %v1360
      %1435 = vmatpush.xpose.msra.mxu0 %v1357
      %1436 = vmatpush.xpose.msra.mxu0 %v1354
      %1437 = vmatpush.xpose.msra.mxu0 %v1351
      %1438 = vmatpush.xpose.msra.mxu0 %v1348
      %1439 = vmatpush.xpose.msra.mxu0 %v1345
      %1440 = vmatpush.xpose.msra.mxu0 %v1342
      %1441 = vmatpush.xpose.msra.mxu0 %v1339
      %1442 = vmatpush.xpose.msra.mxu0 %v1336
      %1443 = vmatpush.xpose.msra.mxu0 %v1333
      %1444 = vmatmul.f32.gmra.mxu0 %v1330
      %v1445 = vpop.f32.mrf.mxu0
      %v1446 = vadd.f32 0.0, %v1445
      %1447 = vdwg.mxu0
      %1448 = vmatpush.xpose.msra.mxu0 %v1426
      %1449 = vmatpush.xpose.msra.mxu0 %v1423
      %1450 = vmatpush.xpose.msra.mxu0 %v1420
      %1451 = vmatpush.xpose.msra.mxu0 %v1417
      %1452 = vmatpush.xpose.msra.mxu0 %v1414
      %1453 = vmatpush.xpose.msra.mxu0 %v1411
      %1454 = vmatpush.xpose.msra.mxu0 %v1408
      %1455 = vmatpush.xpose.msra.mxu0 %v1405
      %1456 = vmatpush.xpose.msra.mxu0 %v1402
      %1457 = vmatpush.xpose.msra.mxu0 %v1399
      %1458 = vmatpush.xpose.msra.mxu0 %v1396
      %1459 = vmatpush.xpose.msra.mxu0 %v1393
      %1460 = vmatpush.xpose.msra.mxu0 %v1390
      %1461 = vmatpush.xpose.msra.mxu0 %v1387
      %1462 = vmatpush.xpose.msra.mxu0 %v1384
      %1463 = vmatpush.xpose.msra.mxu0 %v1381
      %1464 = vmatmul.f32.gmra.mxu0 %v1330
      %v1465 = vpop.f32.mrf.mxu0
      %v1466 = vadd.f32 0.0, %v1465
      %1467 = vdwg.mxu0
      %v1468 = vadd.f32 %v1290, %v1446
      %v1469 = vadd.f32 %v1291, %v1466
      %v1470 = vld [vmem:[%s1294 + $0x1] sm:$0xff]
      %v1471 = vld [vmem:[%s1294 + $0x9] sm:$0xff]
      %v1472 = vld [vmem:[%s1294 + $0x19] sm:$0xff]
      %v1473 = vld [vmem:[%s1294 + $0x21] sm:$0xff]
      %v1474 = vld [vmem:[%s1294 + $0x31] sm:$0xff]
      %v1475 = vld [vmem:[%s1294 + $0x39] sm:$0xff]
      %v1476 = vld [vmem:[%s1294 + $0x49] sm:$0xff]
      %v1477 = vld [vmem:[%s1294 + $0x51] sm:$0xff]
      %v1478 = vld [vmem:[%s1294 + $0x61] sm:$0xff]
      %v1479 = vld [vmem:[%s1294 + $0x69] sm:$0xff]
      %v1480 = vld [vmem:[%s1294 + $0x79] sm:$0xff]
      %v1481 = vld [vmem:[%s1294 + $0x81] sm:$0xff]
      %v1482 = vld [vmem:[%s1294 + $0x91] sm:$0xff]
      %v1483 = vld [vmem:[%s1294 + $0x99] sm:$0xff]
      %v1484 = vld [vmem:[%s1294 + $0xa9] sm:$0xff]
      %v1485 = vld [vmem:[%s1294 + $0xb1] sm:$0xff]
      %v1486 = vld [vmem:[%s1294 + $0xc1] sm:$0xff]
      %v1487 = vld [vmem:[%s1294 + $0xc9] sm:$0xff]
      %v1488 = vld [vmem:[%s1294 + $0xd9] sm:$0xff]
      %v1489 = vld [vmem:[%s1294 + $0xe1] sm:$0xff]
      %v1490 = vld [vmem:[%s1294 + $0xf1] sm:$0xff]
      %v1491 = vld [vmem:[%s1294 + $0xf9] sm:$0xff]
      %v1492 = vld [vmem:[%s1294 + $0x109] sm:$0xff]
      %v1493 = vld [vmem:[%s1294 + $0x111] sm:$0xff]
      %v1494 = vld [vmem:[%s1294 + $0x121] sm:$0xff]
      %v1495 = vld [vmem:[%s1294 + $0x129] sm:$0xff]
      %v1496 = vld [vmem:[%s1294 + $0x139] sm:$0xff]
      %v1497 = vld [vmem:[%s1294 + $0x141] sm:$0xff]
      %v1498 = vld [vmem:[%s1294 + $0x151] sm:$0xff]
      %v1499 = vld [vmem:[%s1294 + $0x159] sm:$0xff]
      %v1500 = vld [vmem:[%s1294 + $0x169] sm:$0xff]
      %v1501 = vld [vmem:[%s1294 + $0x171] sm:$0xff]
      %s1502 = scalar_lea.vmem %s1, 56
      %v1503 = vld [vmem:[%s1502] sm:$0xff]
      %v1505 = vsel %vm310, %v1503, 0
      %v1508 = vsel %vm310, %v1470, 0
      %v1511 = vsel %vm310, %v1471, 0
      %v1514 = vsel %vm310, %v1472, 0
      %v1517 = vsel %vm310, %v1473, 0
      %v1520 = vsel %vm310, %v1474, 0
      %v1523 = vsel %vm310, %v1475, 0
      %v1526 = vsel %vm310, %v1476, 0
      %v1529 = vsel %vm310, %v1477, 0
      %v1532 = vsel %vm310, %v1478, 0
      %v1535 = vsel %vm310, %v1479, 0
      %v1538 = vsel %vm310, %v1480, 0
      %v1541 = vsel %vm310, %v1481, 0
      %v1544 = vsel %vm310, %v1482, 0
      %v1547 = vsel %vm310, %v1483, 0
      %v1550 = vsel %vm310, %v1484, 0
      %v1553 = vsel %vm310, %v1485, 0
      %v1556 = vsel %vm310, %v1486, 0
      %v1559 = vsel %vm310, %v1487, 0
      %v1562 = vsel %vm310, %v1488, 0
      %v1565 = vsel %vm310, %v1489, 0
      %v1568 = vsel %vm310, %v1490, 0
      %v1571 = vsel %vm310, %v1491, 0
      %v1574 = vsel %vm310, %v1492, 0
      %v1577 = vsel %vm310, %v1493, 0
      %v1580 = vsel %vm310, %v1494, 0
      %v1583 = vsel %vm310, %v1495, 0
      %v1586 = vsel %vm310, %v1496, 0
      %v1589 = vsel %vm310, %v1497, 0
      %v1592 = vsel %vm310, %v1498, 0
      %v1595 = vsel %vm310, %v1499, 0
      %v1598 = vsel %vm310, %v1500, 0
      %v1601 = vsel %vm310, %v1501, 0
      %1603 = vmatpush.xpose.msra.mxu0 %v1553
      %1604 = vmatpush.xpose.msra.mxu0 %v1550
      %1605 = vmatpush.xpose.msra.mxu0 %v1547
      %1606 = vmatpush.xpose.msra.mxu0 %v1544
      %1607 = vmatpush.xpose.msra.mxu0 %v1541
      %1608 = vmatpush.xpose.msra.mxu0 %v1538
      %1609 = vmatpush.xpose.msra.mxu0 %v1535
      %1610 = vmatpush.xpose.msra.mxu0 %v1532
      %1611 = vmatpush.xpose.msra.mxu0 %v1529
      %1612 = vmatpush.xpose.msra.mxu0 %v1526
      %1613 = vmatpush.xpose.msra.mxu0 %v1523
      %1614 = vmatpush.xpose.msra.mxu0 %v1520
      %1615 = vmatpush.xpose.msra.mxu0 %v1517
      %1616 = vmatpush.xpose.msra.mxu0 %v1514
      %1617 = vmatpush.xpose.msra.mxu0 %v1511
      %1618 = vmatpush.xpose.msra.mxu0 %v1508
      %1619 = vmatmul.f32.gmra.mxu0 %v1505
      %v1620 = vpop.f32.mrf.mxu0
      %v1621 = vadd.f32 0.0, %v1620
      %1622 = vdwg.mxu0
      %1623 = vmatpush.xpose.msra.mxu0 %v1601
      %1624 = vmatpush.xpose.msra.mxu0 %v1598
      %1625 = vmatpush.xpose.msra.mxu0 %v1595
      %1626 = vmatpush.xpose.msra.mxu0 %v1592
      %1627 = vmatpush.xpose.msra.mxu0 %v1589
      %1628 = vmatpush.xpose.msra.mxu0 %v1586
      %1629 = vmatpush.xpose.msra.mxu0 %v1583
      %1630 = vmatpush.xpose.msra.mxu0 %v1580
      %1631 = vmatpush.xpose.msra.mxu0 %v1577
      %1632 = vmatpush.xpose.msra.mxu0 %v1574
      %1633 = vmatpush.xpose.msra.mxu0 %v1571
      %1634 = vmatpush.xpose.msra.mxu0 %v1568
      %1635 = vmatpush.xpose.msra.mxu0 %v1565
      %1636 = vmatpush.xpose.msra.mxu0 %v1562
      %1637 = vmatpush.xpose.msra.mxu0 %v1559
      %1638 = vmatpush.xpose.msra.mxu0 %v1556
      %1639 = vmatmul.f32.gmra.mxu0 %v1505
      %v1640 = vpop.f32.mrf.mxu0
      %v1641 = vadd.f32 0.0, %v1640
      %1642 = vdwg.mxu0
      %v1643 = vadd.f32 %v1468, %v1621
      %v1644 = vadd.f32 %v1469, %v1641
      %v1645 = vld [vmem:[%s1294 + $0x2] sm:$0xff]
      %v1646 = vld [vmem:[%s1294 + $0xa] sm:$0xff]
      %v1647 = vld [vmem:[%s1294 + $0x1a] sm:$0xff]
      %v1648 = vld [vmem:[%s1294 + $0x22] sm:$0xff]
      %v1649 = vld [vmem:[%s1294 + $0x32] sm:$0xff]
      %v1650 = vld [vmem:[%s1294 + $0x3a] sm:$0xff]
      %v1651 = vld [vmem:[%s1294 + $0x4a] sm:$0xff]
      %v1652 = vld [vmem:[%s1294 + $0x52] sm:$0xff]
      %v1653 = vld [vmem:[%s1294 + $0x62] sm:$0xff]
      %v1654 = vld [vmem:[%s1294 + $0x6a] sm:$0xff]
      %v1655 = vld [vmem:[%s1294 + $0x7a] sm:$0xff]
      %v1656 = vld [vmem:[%s1294 + $0x82] sm:$0xff]
      %v1657 = vld [vmem:[%s1294 + $0x92] sm:$0xff]
      %v1658 = vld [vmem:[%s1294 + $0x9a] sm:$0xff]
      %v1659 = vld [vmem:[%s1294 + $0xaa] sm:$0xff]
      %v1660 = vld [vmem:[%s1294 + $0xb2] sm:$0xff]
      %v1661 = vld [vmem:[%s1294 + $0xc2] sm:$0xff]
      %v1662 = vld [vmem:[%s1294 + $0xca] sm:$0xff]
      %v1663 = vld [vmem:[%s1294 + $0xda] sm:$0xff]
      %v1664 = vld [vmem:[%s1294 + $0xe2] sm:$0xff]
      %v1665 = vld [vmem:[%s1294 + $0xf2] sm:$0xff]
      %v1666 = vld [vmem:[%s1294 + $0xfa] sm:$0xff]
      %v1667 = vld [vmem:[%s1294 + $0x10a] sm:$0xff]
      %v1668 = vld [vmem:[%s1294 + $0x112] sm:$0xff]
      %v1669 = vld [vmem:[%s1294 + $0x122] sm:$0xff]
      %v1670 = vld [vmem:[%s1294 + $0x12a] sm:$0xff]
      %v1671 = vld [vmem:[%s1294 + $0x13a] sm:$0xff]
      %v1672 = vld [vmem:[%s1294 + $0x142] sm:$0xff]
      %v1673 = vld [vmem:[%s1294 + $0x152] sm:$0xff]
      %v1674 = vld [vmem:[%s1294 + $0x15a] sm:$0xff]
      %v1675 = vld [vmem:[%s1294 + $0x16a] sm:$0xff]
      %v1676 = vld [vmem:[%s1294 + $0x172] sm:$0xff]
      %s1677 = scalar_lea.vmem %s1, 64
      %v1678 = vld [vmem:[%s1677] sm:$0xff]
      %v1680 = vsel %vm310, %v1678, 0
      %v1683 = vsel %vm310, %v1645, 0
      %v1686 = vsel %vm310, %v1646, 0
      %v1689 = vsel %vm310, %v1647, 0
      %v1692 = vsel %vm310, %v1648, 0
      %v1695 = vsel %vm310, %v1649, 0
      %v1698 = vsel %vm310, %v1650, 0
      %v1701 = vsel %vm310, %v1651, 0
      %v1704 = vsel %vm310, %v1652, 0
      %v1707 = vsel %vm310, %v1653, 0
      %v1710 = vsel %vm310, %v1654, 0
      %v1713 = vsel %vm310, %v1655, 0
      %v1716 = vsel %vm310, %v1656, 0
      %v1719 = vsel %vm310, %v1657, 0
      %v1722 = vsel %vm310, %v1658, 0
      %v1725 = vsel %vm310, %v1659, 0
      %v1728 = vsel %vm310, %v1660, 0
      %v1731 = vsel %vm310, %v1661, 0
      %v1734 = vsel %vm310, %v1662, 0
      %v1737 = vsel %vm310, %v1663, 0
      %v1740 = vsel %vm310, %v1664, 0
      %v1743 = vsel %vm310, %v1665, 0
      %v1746 = vsel %vm310, %v1666, 0
      %v1749 = vsel %vm310, %v1667, 0
      %v1752 = vsel %vm310, %v1668, 0
      %v1755 = vsel %vm310, %v1669, 0
      %v1758 = vsel %vm310, %v1670, 0
      %v1761 = vsel %vm310, %v1671, 0
      %v1764 = vsel %vm310, %v1672, 0
      %v1767 = vsel %vm310, %v1673, 0
      %v1770 = vsel %vm310, %v1674, 0
      %v1773 = vsel %vm310, %v1675, 0
      %v1776 = vsel %vm310, %v1676, 0
      %1778 = vmatpush.xpose.msra.mxu0 %v1728
      %1779 = vmatpush.xpose.msra.mxu0 %v1725
      %1780 = vmatpush.xpose.msra.mxu0 %v1722
      %1781 = vmatpush.xpose.msra.mxu0 %v1719
      %1782 = vmatpush.xpose.msra.mxu0 %v1716
      %1783 = vmatpush.xpose.msra.mxu0 %v1713
      %1784 = vmatpush.xpose.msra.mxu0 %v1710
      %1785 = vmatpush.xpose.msra.mxu0 %v1707
      %1786 = vmatpush.xpose.msra.mxu0 %v1704
      %1787 = vmatpush.xpose.msra.mxu0 %v1701
      %1788 = vmatpush.xpose.msra.mxu0 %v1698
      %1789 = vmatpush.xpose.msra.mxu0 %v1695
      %1790 = vmatpush.xpose.msra.mxu0 %v1692
      %1791 = vmatpush.xpose.msra.mxu0 %v1689
      %1792 = vmatpush.xpose.msra.mxu0 %v1686
      %1793 = vmatpush.xpose.msra.mxu0 %v1683
      %1794 = vmatmul.f32.gmra.mxu0 %v1680
      %v1795 = vpop.f32.mrf.mxu0
      %v1796 = vadd.f32 0.0, %v1795
      %1797 = vdwg.mxu0
      %1798 = vmatpush.xpose.msra.mxu0 %v1776
      %1799 = vmatpush.xpose.msra.mxu0 %v1773
      %1800 = vmatpush.xpose.msra.mxu0 %v1770
      %1801 = vmatpush.xpose.msra.mxu0 %v1767
      %1802 = vmatpush.xpose.msra.mxu0 %v1764
      %1803 = vmatpush.xpose.msra.mxu0 %v1761
      %1804 = vmatpush.xpose.msra.mxu0 %v1758
      %1805 = vmatpush.xpose.msra.mxu0 %v1755
      %1806 = vmatpush.xpose.msra.mxu0 %v1752
      %1807 = vmatpush.xpose.msra.mxu0 %v1749
      %1808 = vmatpush.xpose.msra.mxu0 %v1746
      %1809 = vmatpush.xpose.msra.mxu0 %v1743
      %1810 = vmatpush.xpose.msra.mxu0 %v1740
      %1811 = vmatpush.xpose.msra.mxu0 %v1737
      %1812 = vmatpush.xpose.msra.mxu0 %v1734
      %1813 = vmatpush.xpose.msra.mxu0 %v1731
      %1814 = vmatmul.f32.gmra.mxu0 %v1680
      %v1815 = vpop.f32.mrf.mxu0
      %v1816 = vadd.f32 0.0, %v1815
      %1817 = vdwg.mxu0
      %v1818 = vadd.f32 %v1643, %v1796
      %v1819 = vadd.f32 %v1644, %v1816
      %v1820 = vld [vmem:[%s2] sm:$0xff]
      %1822 = vset.pattern.permute.xlu0 0
      %1823 = vperm.xlu0 %1822, %v1820
      %v1824 = vpop.permute.xlu0 %1823
      %v1826 = vadd.f32 %v1818, %v1824
      %v1827 = vadd.f32 %v1819, %v1824
      %1828 = vst [vmem:[%s231] sm:$0xff] %v1826
      %1829 = vst [vmem:[%s231 + $0x8] sm:$0xff] %v1827
      %v1830 = vadd.f32 %v1826, %v1827
      %1831 = vadd.xlane.f32.xlu0 %v1830
      %v1832 = vpop.xlane.xlu0 %1831
      %vm1833 = vcmask 7168
      %1834 = vst.msk [vmem:[%s239] sm:$0xff] %vm1833, %v1832
      %v1835 = vmul.f32 %v1826, %v1826
      %v1836 = vmul.f32 %v1827, %v1827
      %v1837 = vadd.f32 %v1835, %v1836
      %1838 = vadd.xlane.f32.xlu0 %v1837
      %v1839 = vpop.xlane.xlu0 %1838
      %vm1840 = vcmask 15368
      %1841 = vst.msk [vmem:[%s239] sm:$0xff] %vm1840, %v1839
      %s1842 = smul.u32 2, %s21
      %p1843 = scmp.lt.s32.totalorder %s20, 1
      %s1844 = scalar_select %p1843, %s20, 1
      %p1845 = scmp.lt.s32.totalorder %s1842, 1
      %s1846 = scalar_select %p1845, %s1842, 1
      %s1847 = smul.addr %s1844, 2
      %s1848 = sadd.s32 %s1846, %s1847
      %s1849 = smul.addr %s1848, 8
      %s1850 = scalar_lea.vmem %s3, %s1849
      %p1851 = scmp.lt.s32.totalorder %s20, 1
      %s1852 = scalar_select %p1851, %s20, 1
      %p1853 = scmp.lt.s32.totalorder %s21, 0
      %s1854 = scalar_select %p1853, %s21, 0
      %s1855 = sadd.s32 %s1854, %s1852
      %s1856 = smul.addr %s1855, 8
      %s1857 = scalar_lea.vmem %s4, %s1856
      // Predicated region
      $region33: #{convolution_forward.2} parent=31 // pred_check
        %p1858 = pneg %p116
      $region34: #{convolution_forward.2} parent=31 // pred_check_branch
        %1860 = sbr.rel (%p1858) target = $region36
      $region35: #{convolution_forward.2} parent=31 // pred_region
        %s1861 = smul.u32 2, %s21
      $region36: #{convolution_forward.2} parent=31 // pred_fallthru
        _
      // Predicated region
      $region37: #{convolution_forward.2} parent=31 // pred_check
        %p1862 = pneg %p144
      $region38: #{convolution_forward.2} parent=31 // pred_check_branch
        %1864 = sbr.rel (%p1862) target = $region40
      $region39: #{convolution_forward.2} parent=31 // pred_region
        _
      $region40: #{convolution_forward.2} parent=31 // pred_fallthru
        _
    $region32: #{convolution_forward.2} parent=5 // pred_fallthru
      _
    %p1865 = scmp.le.s32.totalorder 2, %s11
    // Predicated region
    $region41: #{convolution_forward.2} parent=5 // pred_check
      %p1866 = pneg %p1865
    $region42: #{convolution_forward.2} parent=5 // pred_check_branch
      %1868 = sbr.rel (%p1866) target = $region44
    $region43: #{convolution_forward.2} parent=5 // pred_region
      %s1869 = ssub.s32 %s11, 2
      // Predicated region
      $region45: #{convolution_forward.2} parent=43 // pred_check
        %p1870 = pneg %p122
      $region46: #{convolution_forward.2} parent=43 // pred_check_branch
        %1872 = sbr.rel (%p1870) target = $region48
      $region47: #{convolution_forward.2} parent=43 // pred_region
        %s1873 = smul.u32 2, %s23
        %p1874 = scmp.lt.s32.totalorder %s22, 1
        %s1875 = scalar_select %p1874, %s22, 1
        %p1876 = scmp.lt.s32.totalorder %s1873, 1
        %s1877 = scalar_select %p1876, %s1873, 1
        %s1878 = smul.addr %s1875, 2
        %s1879 = sadd.s32 %s1877, %s1878
        %s1880 = smul.addr %s1879, 8
        %s1881 = scalar_lea.vmem %s3, %s1880
      $region48: #{convolution_forward.2} parent=43 // pred_fallthru
        _
      // Predicated region
      $region49: #{convolution_forward.2} parent=43 // pred_check
        %p1882 = pneg %p150
      $region50: #{convolution_forward.2} parent=43 // pred_check_branch
        %1884 = sbr.rel (%p1882) target = $region52
      $region51: #{convolution_forward.2} parent=43 // pred_region
        %p1885 = scmp.lt.s32.totalorder %s22, 1
        %s1886 = scalar_select %p1885, %s22, 1
        %p1887 = scmp.lt.s32.totalorder %s23, 0
        %s1888 = scalar_select %p1887, %s23, 0
        %s1889 = sadd.s32 %s1888, %s1886
        %s1890 = smul.addr %s1889, 8
        %s1891 = scalar_lea.vmem %s4, %s1890
      $region52: #{convolution_forward.2} parent=43 // pred_fallthru
        _
    $region44: #{convolution_forward.2} parent=5 // pred_fallthru
      _
  $region6: #{convolution_forward.2} parent=0 // loop_footer
    %s15 = sadd.s32 1, %s11
  $region7: #{convolution_forward.2} parent=0 // loop_footer_branch
    %10 = sbr.rel target = $region3
  $region8: #{convolution_forward.2} parent=0 // loop_exit
    _

</llo_original>
